<compile_context>
chip_gen: v6e
topology: v6e:2x2x1
jax: 0.10.0
libtpu: 0.0.40
codegen_flags: <defaults>
</compile_context>

<pallas_src>
import functools

import jax
import jax.numpy as jnp
from jax import lax
from jax.experimental import pallas as pl
from jax.experimental.pallas import tpu as pltpu


def _round_up(x, m):
    return ((x + m - 1) // m) * m


def _bottleneck_kernel(x_ref, w1_ref, b1_ref, w2_ref, b2_ref, ring_ref,
                       o_ref, xs1_ref, xs2_ref, mid_ref,
                       *, NB, Cin, Cout, Wp, NP, NP_PAD, MID_OFF, SEG):
    """One grid step processes NB images.

    x_ref   : (NB, Cin, LX)        zero-padded flattened NCHW images, LX=(H+4)*Wp;
                                   content at padded rows 2..H+1, cols 1..W.
    w*_ref  : (Cout, 9*C)          fused tap weights; column (dy*3+dx)*C + c  (bf16).
    b*_ref  : (Cout, 1)            f32 biases.
    ring_ref: (1, NP)              0 at padded cols 0 / Wp-1 of each row, 1 elsewhere.
    o_ref   : (NB, Cout, NP_PAD)   per image: NP useful columns (all Wp cols of the H
                                   real rows) followed by don't-care pad lanes.
    xs1_ref : (9*Cin,  NB*NP_PAD)  staged shifted copies of the input (bf16).
    xs2_ref : (9*Cout, NB*NP_PAD)  staged shifted copies of the conv1 activation (bf16).
    mid_ref : (Cout, NB*SEG)       zero-padded conv1 activation; per-image interior of NP
                                   columns starts at lane MID_OFF (128-aligned).
    """
    cdt = xs1_ref.dtype

    b1 = b1_ref[...]          # hoisted bias loads
    b2 = b2_ref[...]
    ring = ring_ref[...]      # (1, NP)

    # ---- zero the small halo / pad regions, unconditionally EVERY step ------------------
    # mid halos must be zero for conv2's tap reads; the xs pad lanes only need to be
    # non-garbage so the (dropped) output pad lanes stay finite.  Re-zeroing each step is
    # a handful of lane-dense stores and avoids the program_id==0 init hazard when the
    # batch axis is split across TensorCores (per-core scratch on v7x).
    z_mid_f = jnp.zeros((Cout, MID_OFF), cdt)
    z_mid_b = jnp.zeros((Cout, SEG - MID_OFF - NP), cdt)
    if NP_PAD > NP:
        z_xs1 = jnp.zeros((9 * Cin, NP_PAD - NP), cdt)
        z_xs2 = jnp.zeros((9 * Cout, NP_PAD - NP), cdt)
    for n in range(NB):
        mid_ref[:, n * SEG:n * SEG + MID_OFF] = z_mid_f
        mid_ref[:, n * SEG + MID_OFF + NP:(n + 1) * SEG] = z_mid_b
        if NP_PAD > NP:
            xs1_ref[:, n * NP_PAD + NP:(n + 1) * NP_PAD] = z_xs1
            xs2_ref[:, n * NP_PAD + NP:(n + 1) * NP_PAD] = z_xs2

    # ---- conv1: stage 9 shifted copies, then ONE fused matmul over the whole block ------
    for n in range(NB):
        dst = n * NP_PAD
        for dy in range(3):
            for dx in range(3):
                t = dy * 3 + dx
                src = (dy + 1) * Wp + dx - 1           # static lane offset into the image
                xs1_ref[t * Cin:(t + 1) * Cin, dst:dst + NP] = x_ref[n, :, src:src + NP]
    acc1 = jnp.dot(w1_ref[...], xs1_ref[...], preferred_element_type=jnp.float32)
    h1 = jnp.maximum(acc1 + b1, 0.0)                   # (Cout, NB*NP_PAD) f32

    # ---- store padded conv1 activation (ring columns zeroed) at 128-aligned offsets -----
    for n in range(NB):
        mid_ref[:, n * SEG + MID_OFF:n * SEG + MID_OFF + NP] = (
            h1[:, n * NP_PAD:n * NP_PAD + NP] * ring).astype(cdt)

    # ---- conv2: same scheme, staging from the zero-padded activation held in VMEM -------
    for n in range(NB):
        dst = n * NP_PAD
        base = n * SEG + MID_OFF - Wp                  # lane of the activation's padded row 0
        for dy in range(3):
            for dx in range(3):
                t = dy * 3 + dx
                src = base + dy * Wp + dx - 1
                xs2_ref[t * Cout:(t + 1) * Cout, dst:dst + NP] = mid_ref[:, src:src + NP]
    acc2 = jnp.dot(w2_ref[...], xs2_ref[...], preferred_element_type=jnp.float32)
    out = jnp.maximum(acc2 + b2, 0.0)                  # (Cout, NB*NP_PAD) f32

    # ---- lane-dense per-image output stores (NP_PAD is a multiple of 128) ---------------
    for n in range(NB):
        o_ref[n] = out[:, n * NP_PAD:(n + 1) * NP_PAD].astype(o_ref.dtype)


def bottleneck_block(x_nchw, w1, b1, w2, b2, *, images_per_step=4,
                     compute_dtype=jnp.bfloat16):
    """x_nchw: (N, Cin, H, W); w: (Cout, Cin, 3, 3) PyTorch OIHW; b: (Cout,)."""
    N, Cin, H, W = x_nchw.shape
    Cout = w1.shape[0]
    Wp = W + 2
    NP = H * Wp                          # useful output columns per image
    NP_PAD = _round_up(NP, 128)          # lane-dense per-image segment / store width
    LX = (H + 4) * Wp                    # flattened padded input length per image
    MID_OFF = 128                        # 128-aligned start of the activation interior
    assert Wp + 1 <= MID_OFF, "image width too large for the fixed 128-lane front halo"
    SEG = _round_up(MID_OFF + NP + Wp + 1, 128)

    # Images per grid step (must divide N).  On v7x prefer NB <= N/2 when N allows it so
    # the "parallel" batch axis can still be split across the two TensorCores.
    NB = max(1, min(images_per_step, N))
    while N % NB:
        NB -= 1

    # Single pad: rows (2,2), cols (1,1).  Content sits at padded rows 2..H+1, cols 1..W
    # and every 3x3 tap becomes a static in-bounds lane slice (start (dy+1)*Wp + dx - 1).
    x_pad = jnp.pad(x_nchw.astype(compute_dtype), ((0, 0), (0, 0), (2, 2), (1, 1)))
    x_flat = x_pad.reshape(N, Cin, LX)

    # OIHW -> fused lane-dense (Cout, 9*C): column (dy*3+dx)*C + c.
    w1_k = jnp.transpose(w1, (0, 2, 3, 1)).reshape(Cout, 9 * Cin).astype(compute_dtype)
    w2_k = jnp.transpose(w2, (0, 2, 3, 1)).reshape(Cout, 9 * Cout).astype(compute_dtype)
    b1_k = b1.reshape(Cout, 1).astype(jnp.float32)
    b2_k = b2.reshape(Cout, 1).astype(jnp.float32)

    # Zeroes the left/right padding column of each activation row before conv2.
    col = jnp.arange(NP, dtype=jnp.int32) % Wp
    ring_mask = ((col != 0) & (col != Wp - 1)).astype(jnp.float32).reshape(1, NP)

    kernel = functools.partial(
        _bottleneck_kernel, NB=NB, Cin=Cin, Cout=Cout, Wp=Wp,
        NP=NP, NP_PAD=NP_PAD, MID_OFF=MID_OFF, SEG=SEG)

    grid_spec = pltpu.PrefetchScalarGridSpec(
        num_scalar_prefetch=0,
        grid=(N // NB,),
        in_specs=[
            pl.BlockSpec((NB, Cin, LX), lambda b: (b, 0, 0)),
            pl.BlockSpec((Cout, 9 * Cin), lambda b: (0, 0)),
            pl.BlockSpec((Cout, 1), lambda b: (0, 0)),
            pl.BlockSpec((Cout, 9 * Cout), lambda b: (0, 0)),
            pl.BlockSpec((Cout, 1), lambda b: (0, 0)),
            pl.BlockSpec((1, NP), lambda b: (0, 0)),
        ],
        out_specs=pl.BlockSpec((NB, Cout, NP_PAD), lambda b: (b, 0, 0)),
        scratch_shapes=[
            pltpu.VMEM((9 * Cin, NB * NP_PAD), compute_dtype),   # conv1 staging slab
            pltpu.VMEM((9 * Cout, NB * NP_PAD), compute_dtype),  # conv2 staging slab
            pltpu.VMEM((Cout, NB * SEG), compute_dtype),         # padded conv1 activation
        ],
    )

    out_flat = pl.pallas_call(
        kernel,
        out_shape=jax.ShapeDtypeStruct((N, Cout, NP_PAD), jnp.float32),
        grid_spec=grid_spec,
        compiler_params=pltpu.CompilerParams(
            dimension_semantics=("parallel",)),   # batch blocks are independent
    )(x_flat, w1_k, b1_k, w2_k, b2_k, ring_mask)

    # Final compaction (drop pad lanes + ring columns) back to true NCHW.  This is one
    # strided copy over the small output in HBM; consumers that can read the (H, Wp)
    # strided layout directly should skip it.
    return out_flat[:, :, :NP].reshape(N, Cout, H, Wp)[:, :, :, 1:1 + W]


def _reference(x_nchw, w1, b1, w2, b2, compute_dtype=jnp.bfloat16):
    """Plain-JAX reference with the same bf16-operand / f32-accumulate quantisation."""
    dn = ("NCHW", "OIHW", "NCHW")
    y = lax.conv_general_dilated(
        x_nchw.astype(compute_dtype), w1.astype(compute_dtype), (1, 1),
        [(1, 1), (1, 1)], dimension_numbers=dn, preferred_element_type=jnp.float32)
    y = jnp.maximum(y + b1.reshape(1, -1, 1, 1), 0.0)
    y = lax.conv_general_dilated(
        y.astype(compute_dtype), w2.astype(compute_dtype), (1, 1),
        [(1, 1), (1, 1)], dimension_numbers=dn, preferred_element_type=jnp.float32)
    y = jnp.maximum(y + b2.reshape(1, -1, 1, 1), 0.0)
    return y


if __name__ == "__main__":
    # BottleneckBlock(in_channels=4, out_channels=8) on a (2, 4, 16, 16) input.
    N, Cin, H, W = 2, 4, 16, 16
    Cout = 8

    key = jax.random.PRNGKey(0)
    kx, kw1, kb1, kw2, kb2 = jax.random.split(key, 5)

    x = jax.random.normal(kx, (N, Cin, H, W), dtype=jnp.float32)
    # PyTorch shapes: OIHW weights, (Cout,) biases.
    w1 = 0.2 * jax.random.normal(kw1, (Cout, Cin, 3, 3), dtype=jnp.float32)
    b1 = 0.1 * jax.random.normal(kb1, (Cout,), dtype=jnp.float32)
    w2 = 0.2 * jax.random.normal(kw2, (Cout, Cout, 3, 3), dtype=jnp.float32)
    b2 = 0.1 * jax.random.normal(kb2, (Cout,), dtype=jnp.float32)

    out = jax.block_until_ready(bottleneck_block(x, w1, b1, w2, b2))
    assert out.shape == (N, Cout, H, W), out.shape

    ref = jax.block_until_ready(_reference(x, w1, b1, w2, b2))
    max_err = float(jnp.max(jnp.abs(out - ref)))
    assert max_err < 1e-2, f"mismatch vs reference: {max_err}"

    print("KERNEL_OK")
</pallas_src>

<mosaic_0001>
module attributes {stable_mosaic.version = 11 : i64} {
  func.func @_bottleneck_kernel(%arg0: i32, %arg1: memref<2x4x360xbf16, #tpu.memory_space<vmem>>, %arg2: memref<8x36xbf16, #tpu.memory_space<vmem>>, %arg3: memref<8x1xf32, #tpu.memory_space<vmem>>, %arg4: memref<8x72xbf16, #tpu.memory_space<vmem>>, %arg5: memref<8x1xf32, #tpu.memory_space<vmem>>, %arg6: memref<1x288xf32, #tpu.memory_space<vmem>>, %arg7: memref<2x8x384xf32, #tpu.memory_space<vmem>>, %arg8: memref<36x768xbf16, #tpu.memory_space<vmem>>, %arg9: memref<72x768xbf16, #tpu.memory_space<vmem>>, %arg10: memref<8x1024xbf16, #tpu.memory_space<vmem>>) attributes {dimension_semantics = [#tpu.dimension_semantics<parallel>], iteration_bounds = array<i64: 1>, scalar_prefetch = 0 : i64, scratch_operands = 3 : i64, tpu.core_type = #tpu.core_type<tc>, window_params = [{transform_indices = @transform_0, window_bounds = array<i64: 2, 4, 360>}, {pipeline_mode = #tpu.pipeline_mode<synchronous>, transform_indices = @transform_1, window_bounds = array<i64: 8, 36>}, {pipeline_mode = #tpu.pipeline_mode<synchronous>, transform_indices = @transform_2, window_bounds = array<i64: 8, 1>}, {pipeline_mode = #tpu.pipeline_mode<synchronous>, transform_indices = @transform_3, window_bounds = array<i64: 8, 72>}, {pipeline_mode = #tpu.pipeline_mode<synchronous>, transform_indices = @transform_4, window_bounds = array<i64: 8, 1>}, {pipeline_mode = #tpu.pipeline_mode<synchronous>, transform_indices = @transform_5, window_bounds = array<i64: 1, 288>}, {transform_indices = @transform_6, window_bounds = array<i64: 2, 8, 384>}]} {
    %c0 = arith.constant 0 : index
    %c0_0 = arith.constant 0 : index
    %0 = vector.load %arg3[%c0, %c0_0] : memref<8x1xf32, #tpu.memory_space<vmem>>, vector<8x1xf32>
    %c0_1 = arith.constant 0 : index
    %c0_2 = arith.constant 0 : index
    %1 = vector.load %arg5[%c0_1, %c0_2] : memref<8x1xf32, #tpu.memory_space<vmem>>, vector<8x1xf32>
    %c0_3 = arith.constant 0 : index
    %c0_4 = arith.constant 0 : index
    %2 = vector.load %arg6[%c0_3, %c0_4] : memref<1x288xf32, #tpu.memory_space<vmem>>, vector<1x288xf32>
    %cst = arith.constant 0.000000e+00 : bf16
    %3 = vector.broadcast %cst : bf16 to vector<8x128xbf16>
    %cst_5 = arith.constant 0.000000e+00 : bf16
    %4 = vector.broadcast %cst_5 : bf16 to vector<8x96xbf16>
    %cst_6 = arith.constant 0.000000e+00 : bf16
    %5 = vector.broadcast %cst_6 : bf16 to vector<36x96xbf16>
    %cst_7 = arith.constant 0.000000e+00 : bf16
    %6 = vector.broadcast %cst_7 : bf16 to vector<72x96xbf16>
    %c0_8 = arith.constant 0 : index
    %c0_9 = arith.constant 0 : index
    %7 = vector.load %arg10[%c0_8, %c0_9] : memref<8x1024xbf16, #tpu.memory_space<vmem>>, vector<8x128xbf16>
    tpu.vector_store %arg10[%c0_8, %c0_9], %3 {strides = array<i32>} : memref<8x1024xbf16, #tpu.memory_space<vmem>>, vector<8x128xbf16>,
    %c0_10 = arith.constant 0 : index
    %c416 = arith.constant 416 : index
    %8 = vector.load %arg10[%c0_10, %c416] : memref<8x1024xbf16, #tpu.memory_space<vmem>>, vector<8x96xbf16>
    tpu.vector_store %arg10[%c0_10, %c416], %4 {strides = array<i32>} : memref<8x1024xbf16, #tpu.memory_space<vmem>>, vector<8x96xbf16>,
    %c0_11 = arith.constant 0 : index
    %c288 = arith.constant 288 : index
    %9 = vector.load %arg8[%c0_11, %c288] : memref<36x768xbf16, #tpu.memory_space<vmem>>, vector<36x96xbf16>
    tpu.vector_store %arg8[%c0_11, %c288], %5 {strides = array<i32>} : memref<36x768xbf16, #tpu.memory_space<vmem>>, vector<36x96xbf16>,
    %c0_12 = arith.constant 0 : index
    %c288_13 = arith.constant 288 : index
    %10 = vector.load %arg9[%c0_12, %c288_13] : memref<72x768xbf16, #tpu.memory_space<vmem>>, vector<72x96xbf16>
    tpu.vector_store %arg9[%c0_12, %c288_13], %6 {strides = array<i32>} : memref<72x768xbf16, #tpu.memory_space<vmem>>, vector<72x96xbf16>,
    %c0_14 = arith.constant 0 : index
    %c512 = arith.constant 512 : index
    %11 = vector.load %arg10[%c0_14, %c512] : memref<8x1024xbf16, #tpu.memory_space<vmem>>, vector<8x128xbf16>
    tpu.vector_store %arg10[%c0_14, %c512], %3 {strides = array<i32>} : memref<8x1024xbf16, #tpu.memory_space<vmem>>, vector<8x128xbf16>,
    %c0_15 = arith.constant 0 : index
    %c928 = arith.constant 928 : index
    %12 = vector.load %arg10[%c0_15, %c928] : memref<8x1024xbf16, #tpu.memory_space<vmem>>, vector<8x96xbf16>
    tpu.vector_store %arg10[%c0_15, %c928], %4 {strides = array<i32>} : memref<8x1024xbf16, #tpu.memory_space<vmem>>, vector<8x96xbf16>,
    %c0_16 = arith.constant 0 : index
    %c672 = arith.constant 672 : index
    %13 = vector.load %arg8[%c0_16, %c672] : memref<36x768xbf16, #tpu.memory_space<vmem>>, vector<36x96xbf16>
    tpu.vector_store %arg8[%c0_16, %c672], %5 {strides = array<i32>} : memref<36x768xbf16, #tpu.memory_space<vmem>>, vector<36x96xbf16>,
    %c0_17 = arith.constant 0 : index
    %c672_18 = arith.constant 672 : index
    %14 = vector.load %arg9[%c0_17, %c672_18] : memref<72x768xbf16, #tpu.memory_space<vmem>>, vector<72x96xbf16>
    tpu.vector_store %arg9[%c0_17, %c672_18], %6 {strides = array<i32>} : memref<72x768xbf16, #tpu.memory_space<vmem>>, vector<72x96xbf16>,
    %c0_19 = arith.constant 0 : index
    %c0_20 = arith.constant 0 : index
    %c17 = arith.constant 17 : index
    %15 = vector.load %arg1[%c0_19, %c0_20, %c17] : memref<2x4x360xbf16, #tpu.memory_space<vmem>>, vector<1x4x288xbf16>
    %16 = vector.shape_cast %15 : vector<1x4x288xbf16> to vector<4x288xbf16>
    %c0_21 = arith.constant 0 : index
    %c0_22 = arith.constant 0 : index
    %17 = vector.load %arg8[%c0_21, %c0_22] : memref<36x768xbf16, #tpu.memory_space<vmem>>, vector<4x288xbf16>
    tpu.vector_store %arg8[%c0_21, %c0_22], %16 {strides = array<i32>} : memref<36x768xbf16, #tpu.memory_space<vmem>>, vector<4x288xbf16>,
    %c0_23 = arith.constant 0 : index
    %c0_24 = arith.constant 0 : index
    %c18 = arith.constant 18 : index
    %18 = vector.load %arg1[%c0_23, %c0_24, %c18] : memref<2x4x360xbf16, #tpu.memory_space<vmem>>, vector<1x4x288xbf16>
    %19 = vector.shape_cast %18 : vector<1x4x288xbf16> to vector<4x288xbf16>
    %c4 = arith.constant 4 : index
    %c0_25 = arith.constant 0 : index
    %20 = vector.load %arg8[%c4, %c0_25] : memref<36x768xbf16, #tpu.memory_space<vmem>>, vector<4x288xbf16>
    tpu.vector_store %arg8[%c4, %c0_25], %19 {strides = array<i32>} : memref<36x768xbf16, #tpu.memory_space<vmem>>, vector<4x288xbf16>,
    %c0_26 = arith.constant 0 : index
    %c0_27 = arith.constant 0 : index
    %c19 = arith.constant 19 : index
    %21 = vector.load %arg1[%c0_26, %c0_27, %c19] : memref<2x4x360xbf16, #tpu.memory_space<vmem>>, vector<1x4x288xbf16>
    %22 = vector.shape_cast %21 : vector<1x4x288xbf16> to vector<4x288xbf16>
    %c8 = arith.constant 8 : index
    %c0_28 = arith.constant 0 : index
    %23 = vector.load %arg8[%c8, %c0_28] : memref<36x768xbf16, #tpu.memory_space<vmem>>, vector<4x288xbf16>
    tpu.vector_store %arg8[%c8, %c0_28], %22 {strides = array<i32>} : memref<36x768xbf16, #tpu.memory_space<vmem>>, vector<4x288xbf16>,
    %c0_29 = arith.constant 0 : index
    %c0_30 = arith.constant 0 : index
    %c35 = arith.constant 35 : index
    %24 = vector.load %arg1[%c0_29, %c0_30, %c35] : memref<2x4x360xbf16, #tpu.memory_space<vmem>>, vector<1x4x288xbf16>
    %25 = vector.shape_cast %24 : vector<1x4x288xbf16> to vector<4x288xbf16>
    %c12 = arith.constant 12 : index
    %c0_31 = arith.constant 0 : index
    %26 = vector.load %arg8[%c12, %c0_31] : memref<36x768xbf16, #tpu.memory_space<vmem>>, vector<4x288xbf16>
    tpu.vector_store %arg8[%c12, %c0_31], %25 {strides = array<i32>} : memref<36x768xbf16, #tpu.memory_space<vmem>>, vector<4x288xbf16>,
    %c0_32 = arith.constant 0 : index
    %c0_33 = arith.constant 0 : index
    %c36 = arith.constant 36 : index
    %27 = vector.load %arg1[%c0_32, %c0_33, %c36] : memref<2x4x360xbf16, #tpu.memory_space<vmem>>, vector<1x4x288xbf16>
    %28 = vector.shape_cast %27 : vector<1x4x288xbf16> to vector<4x288xbf16>
    %c16 = arith.constant 16 : index
    %c0_34 = arith.constant 0 : index
    %29 = vector.load %arg8[%c16, %c0_34] : memref<36x768xbf16, #tpu.memory_space<vmem>>, vector<4x288xbf16>
    tpu.vector_store %arg8[%c16, %c0_34], %28 {strides = array<i32>} : memref<36x768xbf16, #tpu.memory_space<vmem>>, vector<4x288xbf16>,
    %c0_35 = arith.constant 0 : index
    %c0_36 = arith.constant 0 : index
    %c37 = arith.constant 37 : index
    %30 = vector.load %arg1[%c0_35, %c0_36, %c37] : memref<2x4x360xbf16, #tpu.memory_space<vmem>>, vector<1x4x288xbf16>
    %31 = vector.shape_cast %30 : vector<1x4x288xbf16> to vector<4x288xbf16>
    %c20 = arith.constant 20 : index
    %c0_37 = arith.constant 0 : index
    %32 = vector.load %arg8[%c20, %c0_37] : memref<36x768xbf16, #tpu.memory_space<vmem>>, vector<4x288xbf16>
    tpu.vector_store %arg8[%c20, %c0_37], %31 {strides = array<i32>} : memref<36x768xbf16, #tpu.memory_space<vmem>>, vector<4x288xbf16>,
    %c0_38 = arith.constant 0 : index
    %c0_39 = arith.constant 0 : index
    %c53 = arith.constant 53 : index
    %33 = vector.load %arg1[%c0_38, %c0_39, %c53] : memref<2x4x360xbf16, #tpu.memory_space<vmem>>, vector<1x4x288xbf16>
    %34 = vector.shape_cast %33 : vector<1x4x288xbf16> to vector<4x288xbf16>
    %c24 = arith.constant 24 : index
    %c0_40 = arith.constant 0 : index
    %35 = vector.load %arg8[%c24, %c0_40] : memref<36x768xbf16, #tpu.memory_space<vmem>>, vector<4x288xbf16>
    tpu.vector_store %arg8[%c24, %c0_40], %34 {strides = array<i32>} : memref<36x768xbf16, #tpu.memory_space<vmem>>, vector<4x288xbf16>,
    %c0_41 = arith.constant 0 : index
    %c0_42 = arith.constant 0 : index
    %c54 = arith.constant 54 : index
    %36 = vector.load %arg1[%c0_41, %c0_42, %c54] : memref<2x4x360xbf16, #tpu.memory_space<vmem>>, vector<1x4x288xbf16>
    %37 = vector.shape_cast %36 : vector<1x4x288xbf16> to vector<4x288xbf16>
    %c28 = arith.constant 28 : index
    %c0_43 = arith.constant 0 : index
    %38 = vector.load %arg8[%c28, %c0_43] : memref<36x768xbf16, #tpu.memory_space<vmem>>, vector<4x288xbf16>
    tpu.vector_store %arg8[%c28, %c0_43], %37 {strides = array<i32>} : memref<36x768xbf16, #tpu.memory_space<vmem>>, vector<4x288xbf16>,
    %c0_44 = arith.constant 0 : index
    %c0_45 = arith.constant 0 : index
    %c55 = arith.constant 55 : index
    %39 = vector.load %arg1[%c0_44, %c0_45, %c55] : memref<2x4x360xbf16, #tpu.memory_space<vmem>>, vector<1x4x288xbf16>
    %40 = vector.shape_cast %39 : vector<1x4x288xbf16> to vector<4x288xbf16>
    %c32 = arith.constant 32 : index
    %c0_46 = arith.constant 0 : index
    %41 = vector.load %arg8[%c32, %c0_46] : memref<36x768xbf16, #tpu.memory_space<vmem>>, vector<4x288xbf16>
    tpu.vector_store %arg8[%c32, %c0_46], %40 {strides = array<i32>} : memref<36x768xbf16, #tpu.memory_space<vmem>>, vector<4x288xbf16>,
    %c1 = arith.constant 1 : index
    %c0_47 = arith.constant 0 : index
    %c17_48 = arith.constant 17 : index
    %42 = vector.load %arg1[%c1, %c0_47, %c17_48] : memref<2x4x360xbf16, #tpu.memory_space<vmem>>, vector<1x4x288xbf16>
    %43 = vector.shape_cast %42 : vector<1x4x288xbf16> to vector<4x288xbf16>
    %c0_49 = arith.constant 0 : index
    %c384 = arith.constant 384 : index
    %44 = vector.load %arg8[%c0_49, %c384] : memref<36x768xbf16, #tpu.memory_space<vmem>>, vector<4x288xbf16>
    tpu.vector_store %arg8[%c0_49, %c384], %43 {strides = array<i32>} : memref<36x768xbf16, #tpu.memory_space<vmem>>, vector<4x288xbf16>,
    %c1_50 = arith.constant 1 : index
    %c0_51 = arith.constant 0 : index
    %c18_52 = arith.constant 18 : index
    %45 = vector.load %arg1[%c1_50, %c0_51, %c18_52] : memref<2x4x360xbf16, #tpu.memory_space<vmem>>, vector<1x4x288xbf16>
    %46 = vector.shape_cast %45 : vector<1x4x288xbf16> to vector<4x288xbf16>
    %c4_53 = arith.constant 4 : index
    %c384_54 = arith.constant 384 : index
    %47 = vector.load %arg8[%c4_53, %c384_54] : memref<36x768xbf16, #tpu.memory_space<vmem>>, vector<4x288xbf16>
    tpu.vector_store %arg8[%c4_53, %c384_54], %46 {strides = array<i32>} : memref<36x768xbf16, #tpu.memory_space<vmem>>, vector<4x288xbf16>,
    %c1_55 = arith.constant 1 : index
    %c0_56 = arith.constant 0 : index
    %c19_57 = arith.constant 19 : index
    %48 = vector.load %arg1[%c1_55, %c0_56, %c19_57] : memref<2x4x360xbf16, #tpu.memory_space<vmem>>, vector<1x4x288xbf16>
    %49 = vector.shape_cast %48 : vector<1x4x288xbf16> to vector<4x288xbf16>
    %c8_58 = arith.constant 8 : index
    %c384_59 = arith.constant 384 : index
    %50 = vector.load %arg8[%c8_58, %c384_59] : memref<36x768xbf16, #tpu.memory_space<vmem>>, vector<4x288xbf16>
    tpu.vector_store %arg8[%c8_58, %c384_59], %49 {strides = array<i32>} : memref<36x768xbf16, #tpu.memory_space<vmem>>, vector<4x288xbf16>,
    %c1_60 = arith.constant 1 : index
    %c0_61 = arith.constant 0 : index
    %c35_62 = arith.constant 35 : index
    %51 = vector.load %arg1[%c1_60, %c0_61, %c35_62] : memref<2x4x360xbf16, #tpu.memory_space<vmem>>, vector<1x4x288xbf16>
    %52 = vector.shape_cast %51 : vector<1x4x288xbf16> to vector<4x288xbf16>
    %c12_63 = arith.constant 12 : index
    %c384_64 = arith.constant 384 : index
    %53 = vector.load %arg8[%c12_63, %c384_64] : memref<36x768xbf16, #tpu.memory_space<vmem>>, vector<4x288xbf16>
    tpu.vector_store %arg8[%c12_63, %c384_64], %52 {strides = array<i32>} : memref<36x768xbf16, #tpu.memory_space<vmem>>, vector<4x288xbf16>,
    %c1_65 = arith.constant 1 : index
    %c0_66 = arith.constant 0 : index
    %c36_67 = arith.constant 36 : index
    %54 = vector.load %arg1[%c1_65, %c0_66, %c36_67] : memref<2x4x360xbf16, #tpu.memory_space<vmem>>, vector<1x4x288xbf16>
    %55 = vector.shape_cast %54 : vector<1x4x288xbf16> to vector<4x288xbf16>
    %c16_68 = arith.constant 16 : index
    %c384_69 = arith.constant 384 : index
    %56 = vector.load %arg8[%c16_68, %c384_69] : memref<36x768xbf16, #tpu.memory_space<vmem>>, vector<4x288xbf16>
    tpu.vector_store %arg8[%c16_68, %c384_69], %55 {strides = array<i32>} : memref<36x768xbf16, #tpu.memory_space<vmem>>, vector<4x288xbf16>,
    %c1_70 = arith.constant 1 : index
    %c0_71 = arith.constant 0 : index
    %c37_72 = arith.constant 37 : index
    %57 = vector.load %arg1[%c1_70, %c0_71, %c37_72] : memref<2x4x360xbf16, #tpu.memory_space<vmem>>, vector<1x4x288xbf16>
    %58 = vector.shape_cast %57 : vector<1x4x288xbf16> to vector<4x288xbf16>
    %c20_73 = arith.constant 20 : index
    %c384_74 = arith.constant 384 : index
    %59 = vector.load %arg8[%c20_73, %c384_74] : memref<36x768xbf16, #tpu.memory_space<vmem>>, vector<4x288xbf16>
    tpu.vector_store %arg8[%c20_73, %c384_74], %58 {strides = array<i32>} : memref<36x768xbf16, #tpu.memory_space<vmem>>, vector<4x288xbf16>,
    %c1_75 = arith.constant 1 : index
    %c0_76 = arith.constant 0 : index
    %c53_77 = arith.constant 53 : index
    %60 = vector.load %arg1[%c1_75, %c0_76, %c53_77] : memref<2x4x360xbf16, #tpu.memory_space<vmem>>, vector<1x4x288xbf16>
    %61 = vector.shape_cast %60 : vector<1x4x288xbf16> to vector<4x288xbf16>
    %c24_78 = arith.constant 24 : index
    %c384_79 = arith.constant 384 : index
    %62 = vector.load %arg8[%c24_78, %c384_79] : memref<36x768xbf16, #tpu.memory_space<vmem>>, vector<4x288xbf16>
    tpu.vector_store %arg8[%c24_78, %c384_79], %61 {strides = array<i32>} : memref<36x768xbf16, #tpu.memory_space<vmem>>, vector<4x288xbf16>,
    %c1_80 = arith.constant 1 : index
    %c0_81 = arith.constant 0 : index
    %c54_82 = arith.constant 54 : index
    %63 = vector.load %arg1[%c1_80, %c0_81, %c54_82] : memref<2x4x360xbf16, #tpu.memory_space<vmem>>, vector<1x4x288xbf16>
    %64 = vector.shape_cast %63 : vector<1x4x288xbf16> to vector<4x288xbf16>
    %c28_83 = arith.constant 28 : index
    %c384_84 = arith.constant 384 : index
    %65 = vector.load %arg8[%c28_83, %c384_84] : memref<36x768xbf16, #tpu.memory_space<vmem>>, vector<4x288xbf16>
    tpu.vector_store %arg8[%c28_83, %c384_84], %64 {strides = array<i32>} : memref<36x768xbf16, #tpu.memory_space<vmem>>, vector<4x288xbf16>,
    %c1_85 = arith.constant 1 : index
    %c0_86 = arith.constant 0 : index
    %c55_87 = arith.constant 55 : index
    %66 = vector.load %arg1[%c1_85, %c0_86, %c55_87] : memref<2x4x360xbf16, #tpu.memory_space<vmem>>, vector<1x4x288xbf16>
    %67 = vector.shape_cast %66 : vector<1x4x288xbf16> to vector<4x288xbf16>
    %c32_88 = arith.constant 32 : index
    %c384_89 = arith.constant 384 : index
    %68 = vector.load %arg8[%c32_88, %c384_89] : memref<36x768xbf16, #tpu.memory_space<vmem>>, vector<4x288xbf16>
    tpu.vector_store %arg8[%c32_88, %c384_89], %67 {strides = array<i32>} : memref<36x768xbf16, #tpu.memory_space<vmem>>, vector<4x288xbf16>,
    %c0_90 = arith.constant 0 : index
    %c0_91 = arith.constant 0 : index
    %69 = vector.load %arg2[%c0_90, %c0_91] : memref<8x36xbf16, #tpu.memory_space<vmem>>, vector<8x36xbf16>
    %c0_92 = arith.constant 0 : index
    %c0_93 = arith.constant 0 : index
    %70 = vector.load %arg8[%c0_92, %c0_93] : memref<36x768xbf16, #tpu.memory_space<vmem>>, vector<36x768xbf16>
    %cst_94 = arith.constant dense<0.000000e+00> : vector<8x768xf32>
    %71 = tpu.matmul %69, %70, %cst_94 {dimension_numbers = #tpu.dot_dimension_numbers<[1], [0], [0], [1], [0, 0, 1, 1], [], []>} : vector<8x36xbf16>, vector<36x768xbf16>, vector<8x768xf32> -> vector<8x768xf32>
    %72 = vector.broadcast %0 : vector<8x1xf32> to vector<8x768xf32>
    %73 = arith.addf %71, %72 : vector<8x768xf32>
    %cst_95 = arith.constant 0.000000e+00 : f32
    %74 = vector.broadcast %cst_95 : f32 to vector<8x768xf32>
    %75 = arith.maximumf %73, %74 : vector<8x768xf32>
    %76 = vector.extract_strided_slice %75 {offsets = [0, 0], sizes = [8, 288], strides = [1, 1]} : vector<8x768xf32> to vector<8x288xf32>
    %77 = vector.broadcast %2 : vector<1x288xf32> to vector<8x288xf32>
    %78 = arith.mulf %76, %77 : vector<8x288xf32>
    %79 = arith.truncf %78 : vector<8x288xf32> to vector<8x288xbf16>
    %c0_96 = arith.constant 0 : index
    %c128 = arith.constant 128 : index
    %80 = vector.load %arg10[%c0_96, %c128] : memref<8x1024xbf16, #tpu.memory_space<vmem>>, vector<8x288xbf16>
    tpu.vector_store %arg10[%c0_96, %c128], %79 {strides = array<i32>} : memref<8x1024xbf16, #tpu.memory_space<vmem>>, vector<8x288xbf16>,
    %81 = vector.extract_strided_slice %75 {offsets = [0, 384], sizes = [8, 288], strides = [1, 1]} : vector<8x768xf32> to vector<8x288xf32>
    %82 = vector.broadcast %2 : vector<1x288xf32> to vector<8x288xf32>
    %83 = arith.mulf %81, %82 : vector<8x288xf32>
    %84 = arith.truncf %83 : vector<8x288xf32> to vector<8x288xbf16>
    %c0_97 = arith.constant 0 : index
    %c640 = arith.constant 640 : index
    %85 = vector.load %arg10[%c0_97, %c640] : memref<8x1024xbf16, #tpu.memory_space<vmem>>, vector<8x288xbf16>
    tpu.vector_store %arg10[%c0_97, %c640], %84 {strides = array<i32>} : memref<8x1024xbf16, #tpu.memory_space<vmem>>, vector<8x288xbf16>,
    %c0_98 = arith.constant 0 : index
    %c109 = arith.constant 109 : index
    %86 = vector.load %arg10[%c0_98, %c109] : memref<8x1024xbf16, #tpu.memory_space<vmem>>, vector<8x288xbf16>
    %c0_99 = arith.constant 0 : index
    %c0_100 = arith.constant 0 : index
    %87 = vector.load %arg9[%c0_99, %c0_100] : memref<72x768xbf16, #tpu.memory_space<vmem>>, vector<8x288xbf16>
    tpu.vector_store %arg9[%c0_99, %c0_100], %86 {strides = array<i32>} : memref<72x768xbf16, #tpu.memory_space<vmem>>, vector<8x288xbf16>,
    %c0_101 = arith.constant 0 : index
    %c110 = arith.constant 110 : index
    %88 = vector.load %arg10[%c0_101, %c110] : memref<8x1024xbf16, #tpu.memory_space<vmem>>, vector<8x288xbf16>
    %c8_102 = arith.constant 8 : index
    %c0_103 = arith.constant 0 : index
    %89 = vector.load %arg9[%c8_102, %c0_103] : memref<72x768xbf16, #tpu.memory_space<vmem>>, vector<8x288xbf16>
    tpu.vector_store %arg9[%c8_102, %c0_103], %88 {strides = array<i32>} : memref<72x768xbf16, #tpu.memory_space<vmem>>, vector<8x288xbf16>,
    %c0_104 = arith.constant 0 : index
    %c111 = arith.constant 111 : index
    %90 = vector.load %arg10[%c0_104, %c111] : memref<8x1024xbf16, #tpu.memory_space<vmem>>, vector<8x288xbf16>
    %c16_105 = arith.constant 16 : index
    %c0_106 = arith.constant 0 : index
    %91 = vector.load %arg9[%c16_105, %c0_106] : memref<72x768xbf16, #tpu.memory_space<vmem>>, vector<8x288xbf16>
    tpu.vector_store %arg9[%c16_105, %c0_106], %90 {strides = array<i32>} : memref<72x768xbf16, #tpu.memory_space<vmem>>, vector<8x288xbf16>,
    %c0_107 = arith.constant 0 : index
    %c127 = arith.constant 127 : index
    %92 = vector.load %arg10[%c0_107, %c127] : memref<8x1024xbf16, #tpu.memory_space<vmem>>, vector<8x288xbf16>
    %c24_108 = arith.constant 24 : index
    %c0_109 = arith.constant 0 : index
    %93 = vector.load %arg9[%c24_108, %c0_109] : memref<72x768xbf16, #tpu.memory_space<vmem>>, vector<8x288xbf16>
    tpu.vector_store %arg9[%c24_108, %c0_109], %92 {strides = array<i32>} : memref<72x768xbf16, #tpu.memory_space<vmem>>, vector<8x288xbf16>,
    %c0_110 = arith.constant 0 : index
    %c128_111 = arith.constant 128 : index
    %94 = vector.load %arg10[%c0_110, %c128_111] : memref<8x1024xbf16, #tpu.memory_space<vmem>>, vector<8x288xbf16>
    %c32_112 = arith.constant 32 : index
    %c0_113 = arith.constant 0 : index
    %95 = vector.load %arg9[%c32_112, %c0_113] : memref<72x768xbf16, #tpu.memory_space<vmem>>, vector<8x288xbf16>
    tpu.vector_store %arg9[%c32_112, %c0_113], %94 {strides = array<i32>} : memref<72x768xbf16, #tpu.memory_space<vmem>>, vector<8x288xbf16>,
    %c0_114 = arith.constant 0 : index
    %c129 = arith.constant 129 : index
    %96 = vector.load %arg10[%c0_114, %c129] : memref<8x1024xbf16, #tpu.memory_space<vmem>>, vector<8x288xbf16>
    %c40 = arith.constant 40 : index
    %c0_115 = arith.constant 0 : index
    %97 = vector.load %arg9[%c40, %c0_115] : memref<72x768xbf16, #tpu.memory_space<vmem>>, vector<8x288xbf16>
    tpu.vector_store %arg9[%c40, %c0_115], %96 {strides = array<i32>} : memref<72x768xbf16, #tpu.memory_space<vmem>>, vector<8x288xbf16>,
    %c0_116 = arith.constant 0 : index
    %c145 = arith.constant 145 : index
    %98 = vector.load %arg10[%c0_116, %c145] : memref<8x1024xbf16, #tpu.memory_space<vmem>>, vector<8x288xbf16>
    %c48 = arith.constant 48 : index
    %c0_117 = arith.constant 0 : index
    %99 = vector.load %arg9[%c48, %c0_117] : memref<72x768xbf16, #tpu.memory_space<vmem>>, vector<8x288xbf16>
    tpu.vector_store %arg9[%c48, %c0_117], %98 {strides = array<i32>} : memref<72x768xbf16, #tpu.memory_space<vmem>>, vector<8x288xbf16>,
    %c0_118 = arith.constant 0 : index
    %c146 = arith.constant 146 : index
    %100 = vector.load %arg10[%c0_118, %c146] : memref<8x1024xbf16, #tpu.memory_space<vmem>>, vector<8x288xbf16>
    %c56 = arith.constant 56 : index
    %c0_119 = arith.constant 0 : index
    %101 = vector.load %arg9[%c56, %c0_119] : memref<72x768xbf16, #tpu.memory_space<vmem>>, vector<8x288xbf16>
    tpu.vector_store %arg9[%c56, %c0_119], %100 {strides = array<i32>} : memref<72x768xbf16, #tpu.memory_space<vmem>>, vector<8x288xbf16>,
    %c0_120 = arith.constant 0 : index
    %c147 = arith.constant 147 : index
    %102 = vector.load %arg10[%c0_120, %c147] : memref<8x1024xbf16, #tpu.memory_space<vmem>>, vector<8x288xbf16>
    %c64 = arith.constant 64 : index
    %c0_121 = arith.constant 0 : index
    %103 = vector.load %arg9[%c64, %c0_121] : memref<72x768xbf16, #tpu.memory_space<vmem>>, vector<8x288xbf16>
    tpu.vector_store %arg9[%c64, %c0_121], %102 {strides = array<i32>} : memref<72x768xbf16, #tpu.memory_space<vmem>>, vector<8x288xbf16>,
    %c0_122 = arith.constant 0 : index
    %c621 = arith.constant 621 : index
    %104 = vector.load %arg10[%c0_122, %c621] : memref<8x1024xbf16, #tpu.memory_space<vmem>>, vector<8x288xbf16>
    %c0_123 = arith.constant 0 : index
    %c384_124 = arith.constant 384 : index
    %105 = vector.load %arg9[%c0_123, %c384_124] : memref<72x768xbf16, #tpu.memory_space<vmem>>, vector<8x288xbf16>
    tpu.vector_store %arg9[%c0_123, %c384_124], %104 {strides = array<i32>} : memref<72x768xbf16, #tpu.memory_space<vmem>>, vector<8x288xbf16>,
    %c0_125 = arith.constant 0 : index
    %c622 = arith.constant 622 : index
    %106 = vector.load %arg10[%c0_125, %c622] : memref<8x1024xbf16, #tpu.memory_space<vmem>>, vector<8x288xbf16>
    %c8_126 = arith.constant 8 : index
    %c384_127 = arith.constant 384 : index
    %107 = vector.load %arg9[%c8_126, %c384_127] : memref<72x768xbf16, #tpu.memory_space<vmem>>, vector<8x288xbf16>
    tpu.vector_store %arg9[%c8_126, %c384_127], %106 {strides = array<i32>} : memref<72x768xbf16, #tpu.memory_space<vmem>>, vector<8x288xbf16>,
    %c0_128 = arith.constant 0 : index
    %c623 = arith.constant 623 : index
    %108 = vector.load %arg10[%c0_128, %c623] : memref<8x1024xbf16, #tpu.memory_space<vmem>>, vector<8x288xbf16>
    %c16_129 = arith.constant 16 : index
    %c384_130 = arith.constant 384 : index
    %109 = vector.load %arg9[%c16_129, %c384_130] : memref<72x768xbf16, #tpu.memory_space<vmem>>, vector<8x288xbf16>
    tpu.vector_store %arg9[%c16_129, %c384_130], %108 {strides = array<i32>} : memref<72x768xbf16, #tpu.memory_space<vmem>>, vector<8x288xbf16>,
    %c0_131 = arith.constant 0 : index
    %c639 = arith.constant 639 : index
    %110 = vector.load %arg10[%c0_131, %c639] : memref<8x1024xbf16, #tpu.memory_space<vmem>>, vector<8x288xbf16>
    %c24_132 = arith.constant 24 : index
    %c384_133 = arith.constant 384 : index
    %111 = vector.load %arg9[%c24_132, %c384_133] : memref<72x768xbf16, #tpu.memory_space<vmem>>, vector<8x288xbf16>
    tpu.vector_store %arg9[%c24_132, %c384_133], %110 {strides = array<i32>} : memref<72x768xbf16, #tpu.memory_space<vmem>>, vector<8x288xbf16>,
    %c0_134 = arith.constant 0 : index
    %c640_135 = arith.constant 640 : index
    %112 = vector.load %arg10[%c0_134, %c640_135] : memref<8x1024xbf16, #tpu.memory_space<vmem>>, vector<8x288xbf16>
    %c32_136 = arith.constant 32 : index
    %c384_137 = arith.constant 384 : index
    %113 = vector.load %arg9[%c32_136, %c384_137] : memref<72x768xbf16, #tpu.memory_space<vmem>>, vector<8x288xbf16>
    tpu.vector_store %arg9[%c32_136, %c384_137], %112 {strides = array<i32>} : memref<72x768xbf16, #tpu.memory_space<vmem>>, vector<8x288xbf16>,
    %c0_138 = arith.constant 0 : index
    %c641 = arith.constant 641 : index
    %114 = vector.load %arg10[%c0_138, %c641] : memref<8x1024xbf16, #tpu.memory_space<vmem>>, vector<8x288xbf16>
    %c40_139 = arith.constant 40 : index
    %c384_140 = arith.constant 384 : index
    %115 = vector.load %arg9[%c40_139, %c384_140] : memref<72x768xbf16, #tpu.memory_space<vmem>>, vector<8x288xbf16>
    tpu.vector_store %arg9[%c40_139, %c384_140], %114 {strides = array<i32>} : memref<72x768xbf16, #tpu.memory_space<vmem>>, vector<8x288xbf16>,
    %c0_141 = arith.constant 0 : index
    %c657 = arith.constant 657 : index
    %116 = vector.load %arg10[%c0_141, %c657] : memref<8x1024xbf16, #tpu.memory_space<vmem>>, vector<8x288xbf16>
    %c48_142 = arith.constant 48 : index
    %c384_143 = arith.constant 384 : index
    %117 = vector.load %arg9[%c48_142, %c384_143] : memref<72x768xbf16, #tpu.memory_space<vmem>>, vector<8x288xbf16>
    tpu.vector_store %arg9[%c48_142, %c384_143], %116 {strides = array<i32>} : memref<72x768xbf16, #tpu.memory_space<vmem>>, vector<8x288xbf16>,
    %c0_144 = arith.constant 0 : index
    %c658 = arith.constant 658 : index
    %118 = vector.load %arg10[%c0_144, %c658] : memref<8x1024xbf16, #tpu.memory_space<vmem>>, vector<8x288xbf16>
    %c56_145 = arith.constant 56 : index
    %c384_146 = arith.constant 384 : index
    %119 = vector.load %arg9[%c56_145, %c384_146] : memref<72x768xbf16, #tpu.memory_space<vmem>>, vector<8x288xbf16>
    tpu.vector_store %arg9[%c56_145, %c384_146], %118 {strides = array<i32>} : memref<72x768xbf16, #tpu.memory_space<vmem>>, vector<8x288xbf16>,
    %c0_147 = arith.constant 0 : index
    %c659 = arith.constant 659 : index
    %120 = vector.load %arg10[%c0_147, %c659] : memref<8x1024xbf16, #tpu.memory_space<vmem>>, vector<8x288xbf16>
    %c64_148 = arith.constant 64 : index
    %c384_149 = arith.constant 384 : index
    %121 = vector.load %arg9[%c64_148, %c384_149] : memref<72x768xbf16, #tpu.memory_space<vmem>>, vector<8x288xbf16>
    tpu.vector_store %arg9[%c64_148, %c384_149], %120 {strides = array<i32>} : memref<72x768xbf16, #tpu.memory_space<vmem>>, vector<8x288xbf16>,
    %c0_150 = arith.constant 0 : index
    %c0_151 = arith.constant 0 : index
    %122 = vector.load %arg4[%c0_150, %c0_151] : memref<8x72xbf16, #tpu.memory_space<vmem>>, vector<8x72xbf16>
    %c0_152 = arith.constant 0 : index
    %c0_153 = arith.constant 0 : index
    %123 = vector.load %arg9[%c0_152, %c0_153] : memref<72x768xbf16, #tpu.memory_space<vmem>>, vector<72x768xbf16>
    %cst_154 = arith.constant dense<0.000000e+00> : vector<8x768xf32>
    %124 = tpu.matmul %122, %123, %cst_154 {dimension_numbers = #tpu.dot_dimension_numbers<[1], [0], [0], [1], [0, 0, 1, 1], [], []>} : vector<8x72xbf16>, vector<72x768xbf16>, vector<8x768xf32> -> vector<8x768xf32>
    %125 = vector.broadcast %1 : vector<8x1xf32> to vector<8x768xf32>
    %126 = arith.addf %124, %125 : vector<8x768xf32>
    %cst_155 = arith.constant 0.000000e+00 : f32
    %127 = vector.broadcast %cst_155 : f32 to vector<8x768xf32>
    %128 = arith.maximumf %126, %127 : vector<8x768xf32>
    %129 = vector.extract_strided_slice %128 {offsets = [0, 0], sizes = [8, 384], strides = [1, 1]} : vector<8x768xf32> to vector<8x384xf32>
    %c0_156 = arith.constant 0 : index
    %c0_157 = arith.constant 0 : index
    %c0_158 = arith.constant 0 : index
    %130 = vector.load %arg7[%c0_156, %c0_157, %c0_158] : memref<2x8x384xf32, #tpu.memory_space<vmem>>, vector<1x8x384xf32>
    %131 = vector.shape_cast %130 : vector<1x8x384xf32> to vector<8x384xf32>
    %132 = vector.shape_cast %129 : vector<8x384xf32> to vector<1x8x384xf32>
    tpu.vector_store %arg7[%c0_156, %c0_157, %c0_158], %132 {strides = array<i32>} : memref<2x8x384xf32, #tpu.memory_space<vmem>>, vector<1x8x384xf32>,
    %133 = vector.extract_strided_slice %128 {offsets = [0, 384], sizes = [8, 384], strides = [1, 1]} : vector<8x768xf32> to vector<8x384xf32>
    %c1_159 = arith.constant 1 : index
    %c0_160 = arith.constant 0 : index
    %c0_161 = arith.constant 0 : index
    %134 = vector.load %arg7[%c1_159, %c0_160, %c0_161] : memref<2x8x384xf32, #tpu.memory_space<vmem>>, vector<1x8x384xf32>
    %135 = vector.shape_cast %134 : vector<1x8x384xf32> to vector<8x384xf32>
    %136 = vector.shape_cast %133 : vector<8x384xf32> to vector<1x8x384xf32>
    tpu.vector_store %arg7[%c1_159, %c0_160, %c0_161], %136 {strides = array<i32>} : memref<2x8x384xf32, #tpu.memory_space<vmem>>, vector<1x8x384xf32>,
    return
  }
  func.func @transform_0(%arg0: i32) -> (i32, i32, i32) {
    %c0_i32 = arith.constant 0 : i32
    %c0_i32_0 = arith.constant 0 : i32
    %c0_i32_1 = arith.constant 0 : i32
    return %arg0, %c0_i32, %c0_i32_0 : i32, i32, i32
  }
  func.func @transform_1(%arg0: i32) -> (i32, i32) {
    %c0_i32 = arith.constant 0 : i32
    %c0_i32_0 = arith.constant 0 : i32
    %c0_i32_1 = arith.constant 0 : i32
    return %c0_i32, %c0_i32_0 : i32, i32
  }
  func.func @transform_2(%arg0: i32) -> (i32, i32) {
    %c0_i32 = arith.constant 0 : i32
    %c0_i32_0 = arith.constant 0 : i32
    %c0_i32_1 = arith.constant 0 : i32
    return %c0_i32, %c0_i32_0 : i32, i32
  }
  func.func @transform_3(%arg0: i32) -> (i32, i32) {
    %c0_i32 = arith.constant 0 : i32
    %c0_i32_0 = arith.constant 0 : i32
    %c0_i32_1 = arith.constant 0 : i32
    return %c0_i32, %c0_i32_0 : i32, i32
  }
  func.func @transform_4(%arg0: i32) -> (i32, i32) {
    %c0_i32 = arith.constant 0 : i32
    %c0_i32_0 = arith.constant 0 : i32
    %c0_i32_1 = arith.constant 0 : i32
    return %c0_i32, %c0_i32_0 : i32, i32
  }
  func.func @transform_5(%arg0: i32) -> (i32, i32) {
    %c0_i32 = arith.constant 0 : i32
    %c0_i32_0 = arith.constant 0 : i32
    %c0_i32_1 = arith.constant 0 : i32
    return %c0_i32, %c0_i32_0 : i32, i32
  }
  func.func @transform_6(%arg0: i32) -> (i32, i32, i32) {
    %c0_i32 = arith.constant 0 : i32
    %c0_i32_0 = arith.constant 0 : i32
    %c0_i32_1 = arith.constant 0 : i32
    return %arg0, %c0_i32, %c0_i32_0 : i32, i32, i32
  }
}

</mosaic_0001>

<llo_original>
// kernel: tpu_custom_call.1
$region0: #{tpu_custom_call.1}
  #allocation0 [shape = 'u32[]', space=smem, size = 0x4, offset = 0x4, fixed_abs, tag = 'smem constant byte address 0x4 - core index']
  #allocation1 [shape = 'u32[144,128]{1,0:T(1,128)}', space=vmem, size = 0x12000, scoped, tag = 'internal scratch']
  #allocation2 [shape = 'bf16[36,768]{1,0:T(8,128)(2,1)}', space=vmem, size = 0xf000, scoped, tag = 'scratch operand']
  #allocation3 [shape = 'bf16[72,768]{1,0:T(8,128)(2,1)}', space=vmem, size = 0x1b000, scoped, tag = 'scratch operand']
  #allocation4 [shape = 'bf16[8,1024]{1,0:T(8,128)(2,1)}', space=vmem, size = 0x4000, scoped, tag = 'scratch operand']
  %s0 = inlined_call_operand.vmem [shape: bf16[2,4,360], index: 0, kind: input, shape index: {}]
  %s1 = inlined_call_operand.vmem [shape: bf16[8,36], index: 1, kind: input, shape index: {}]
  %s2 = inlined_call_operand.vmem [shape: f32[8,1], index: 2, kind: input, shape index: {}]
  %s3 = inlined_call_operand.vmem [shape: bf16[8,72], index: 3, kind: input, shape index: {}]
  %s4 = inlined_call_operand.vmem [shape: f32[8,1], index: 4, kind: input, shape index: {}]
  %s5 = inlined_call_operand.vmem [shape: f32[1,288], index: 5, kind: input, shape index: {}]
  %s6 = inlined_call_operand.hbm [shape: f32[2,8,384], index: 6, kind: output, shape index: {}]
  %s7 = sld [smem:[#allocation0]]
  $region34: #{tpu_custom_call.1} parent=0
    _
  %s9 = ssub.s32 1, %s7
  %s10 = scalar_select 0, %s9, %s7
  $region1: #{tpu_custom_call.1} parent=0
    #allocation5 [shape = 'u8[24576]{0}', space=vmem, size = 0x6000, scoped, tag = 'output window, operand 0, single buffered']
    #allocation6 [shape = 's32[1]{0}', space=sflag, size = 0x4, scoped, tag = 'scoped memory for tpu_custom_call.1']
    %11 = vsyncpa [#allocation6], 0
    // Predicated region
    $region2: #{tpu_custom_call.1} parent=1 // pred_check
      _
    $region3: #{tpu_custom_call.1} parent=1 // pred_check_branch
      %13 = sbr.rel (0) target = $region5
    $region4: #{tpu_custom_call.1} parent=1 // pred_region
      _
    $region5: #{tpu_custom_call.1} parent=1 // pred_fallthru
      _
    // Predicated region
    $region6: #{tpu_custom_call.1} parent=1 // pred_check
      _
    $region7: #{tpu_custom_call.1} parent=1 // pred_check_branch
      %15 = sbr.rel (0) target = $region9
    $region8: #{tpu_custom_call.1} parent=1 // pred_region
      _
    $region9: #{tpu_custom_call.1} parent=1 // pred_fallthru
      _
    // Predicated region
    $region10: #{tpu_custom_call.1} parent=1 // pred_check
      _
    $region11: #{tpu_custom_call.1} parent=1 // pred_check_branch
      %17 = sbr.rel (0) target = $region13
    $region12: #{tpu_custom_call.1} parent=1 // pred_region
      _
    $region13: #{tpu_custom_call.1} parent=1 // pred_fallthru
      _
    // Predicated region
    $region14: #{tpu_custom_call.1} parent=1 // pred_check
      _
    $region15: #{tpu_custom_call.1} parent=1 // pred_check_branch
      %19 = sbr.rel (0) target = $region17
    $region16: #{tpu_custom_call.1} parent=1 // pred_region
      _
    $region17: #{tpu_custom_call.1} parent=1 // pred_fallthru
      _
    // Predicated region
    $region18: #{tpu_custom_call.1} parent=1 // pred_check
      _
    $region19: #{tpu_custom_call.1} parent=1 // pred_check_branch
      %21 = sbr.rel (0) target = $region21
    $region20: #{tpu_custom_call.1} parent=1 // pred_region
      _
    $region21: #{tpu_custom_call.1} parent=1 // pred_fallthru
      _
    // Predicated region
    $region22: #{tpu_custom_call.1} parent=1 // pred_check
      _
    $region23: #{tpu_custom_call.1} parent=1 // pred_check_branch
      %23 = sbr.rel (0) target = $region25
    $region24: #{tpu_custom_call.1} parent=1 // pred_region
      _
    $region25: #{tpu_custom_call.1} parent=1 // pred_fallthru
      _
    %v25 = vld [vmem:[%s2] sm:$0xff]
    %v26 = vld [vmem:[%s4] sm:$0xff]
    %v27 = vld [vmem:[%s5] sm:$0x7]
    %28 = vst [vmem:[#allocation4] sm:$0xf] 0
    %vm29 = vcmask 1043712
    %30 = vst.msk [vmem:[#allocation4 + $0xc] sm:$0xf] %vm29, 0
    %31 = vst.msk [vmem:[#allocation2 + $0x8] sm:$0xf] %vm29, 0
    %32 = vst.msk [vmem:[#allocation2 + $0x20] sm:$0xf] %vm29, 0
    %33 = vst.msk [vmem:[#allocation2 + $0x38] sm:$0xf] %vm29, 0
    %34 = vst.msk [vmem:[#allocation2 + $0x50] sm:$0xf] %vm29, 0
    %vm35 = vcmask 1041664
    %36 = vst.msk [vmem:[#allocation2 + $0x68] sm:$0x3] %vm35, 0
    %37 = vst.msk [vmem:[#allocation3 + $0x8] sm:$0xf] %vm29, 0
    %38 = vst.msk [vmem:[#allocation3 + $0x20] sm:$0xf] %vm29, 0
    %39 = vst.msk [vmem:[#allocation3 + $0x38] sm:$0xf] %vm29, 0
    %40 = vst.msk [vmem:[#allocation3 + $0x50] sm:$0xf] %vm29, 0
    %41 = vst.msk [vmem:[#allocation3 + $0x68] sm:$0xf] %vm29, 0
    %42 = vst.msk [vmem:[#allocation3 + $0x80] sm:$0xf] %vm29, 0
    %43 = vst.msk [vmem:[#allocation3 + $0x98] sm:$0xf] %vm29, 0
    %44 = vst.msk [vmem:[#allocation3 + $0xb0] sm:$0xf] %vm29, 0
    %45 = vst.msk [vmem:[#allocation3 + $0xc8] sm:$0xf] %vm29, 0
    %46 = vst [vmem:[#allocation4 + $0x10] sm:$0xf] 0
    %47 = vst.msk [vmem:[#allocation4 + $0x1c] sm:$0xf] %vm29, 0
    %48 = vst.msk [vmem:[#allocation2 + $0x14] sm:$0xf] %vm29, 0
    %49 = vst.msk [vmem:[#allocation2 + $0x2c] sm:$0xf] %vm29, 0
    %50 = vst.msk [vmem:[#allocation2 + $0x44] sm:$0xf] %vm29, 0
    %51 = vst.msk [vmem:[#allocation2 + $0x5c] sm:$0xf] %vm29, 0
    %52 = vst.msk [vmem:[#allocation2 + $0x74] sm:$0x3] %vm35, 0
    %53 = vst.msk [vmem:[#allocation3 + $0x14] sm:$0xf] %vm29, 0
    %54 = vst.msk [vmem:[#allocation3 + $0x2c] sm:$0xf] %vm29, 0
    %55 = vst.msk [vmem:[#allocation3 + $0x44] sm:$0xf] %vm29, 0
    %56 = vst.msk [vmem:[#allocation3 + $0x5c] sm:$0xf] %vm29, 0
    %57 = vst.msk [vmem:[#allocation3 + $0x74] sm:$0xf] %vm29, 0
    %58 = vst.msk [vmem:[#allocation3 + $0x8c] sm:$0xf] %vm29, 0
    %59 = vst.msk [vmem:[#allocation3 + $0xa4] sm:$0xf] %vm29, 0
    %60 = vst.msk [vmem:[#allocation3 + $0xbc] sm:$0xf] %vm29, 0
    %61 = vst.msk [vmem:[#allocation3 + $0xd4] sm:$0xf] %vm29, 0
    %v62 = vld [vmem:[%s0] sm:$0x3f]
    %v64 = vcombine.high %v62, %v62
    %v66 = vunpack.c.l.s4 1983009808
    %v67 = vunpack.c.0.s8 %v66
    %v68 = vlaneseq
    %v69 = vshrl.u32 %v68, 7
    %v70 = vsub.s32 %v67, %v69
    %v71 = vrot.slane %v62, %v70
    %v73 = vunpack.c.l.s4 1983009808
    %v74 = vunpack.c.0.s8 %v73
    %v75 = vlaneseq
    %v76 = vshrl.u32 %v75, 7
    %v77 = vsub.s32 %v74, %v76
    %v78 = vrot.slane %v64, %v77
    %79 = vrot.lane.b32.xlu0 %v71, 111
    %v80 = vpop.permute.xlu0 %79
    %81 = vrot.lane.b32.xlu0 %v78, 111
    %v82 = vpop.permute.xlu0 %81
    %v83 = vrot.slane %v80, 4
    %v84 = vrot.slane %v82, 4
    %vm85 = vcmask 1043456
    %v86 = vsel %vm85, %v83, %v84
    %vm87 = vcmask 908288
    %v88 = vsel %vm87, %v80, %v86
    %91 = vst [vmem:[#allocation2] sm:$0x33] %v88
    %vm92 = vcmask 254976
    %93 = vst.msk [vmem:[#allocation2 + $0x8] sm:$0x3] %vm92, %v82
    %v94 = vld [vmem:[%s0] sm:$0x3f]
    %v96 = vcombine.low %v94, %v94
    %v98 = vunpack.c.l.s4 1983009808
    %v99 = vunpack.c.0.s8 %v98
    %v100 = vlaneseq
    %v101 = vshrl.u32 %v100, 7
    %v102 = vsub.s32 %v99, %v101
    %v103 = vrot.slane %v96, %v102
    %v105 = vunpack.c.l.s4 1983009808
    %v106 = vunpack.c.0.s8 %v105
    %v107 = vlaneseq
    %v108 = vshrl.u32 %v107, 7
    %v109 = vsub.s32 %v106, %v108
    %v110 = vrot.slane %v94, %v109
    %111 = vrot.lane.b32.xlu0 %v103, 110
    %v112 = vpop.permute.xlu0 %111
    %113 = vrot.lane.b32.xlu0 %v110, 110
    %v114 = vpop.permute.xlu0 %113
    %v115 = vrot.slane %v112, 4
    %v116 = vrot.slane %v114, 4
    %v117 = vsel %vm85, %v115, %v116
    %vm118 = vcmask 900096
    %v119 = vsel %vm118, %v112, %v117
    %122 = vst [vmem:[#allocation2] sm:$0xcc] %v119
    %vm123 = vcmask 257026
    %124 = vst.msk [vmem:[#allocation2 + $0x8] sm:$0xc] %vm123, %v114
    %v125 = vld [vmem:[%s0] sm:$0x3f]
    %v127 = vcombine.high %v125, %v125
    %v129 = vunpack.c.l.s4 1983009808
    %v130 = vunpack.c.0.s8 %v129
    %v131 = vlaneseq
    %v132 = vshrl.u32 %v131, 7
    %v133 = vsub.s32 %v130, %v132
    %v134 = vrot.slane %v125, %v133
    %v136 = vunpack.c.l.s4 1983009808
    %v137 = vunpack.c.0.s8 %v136
    %v138 = vlaneseq
    %v139 = vshrl.u32 %v138, 7
    %v140 = vsub.s32 %v137, %v139
    %v141 = vrot.slane %v127, %v140
    %142 = vrot.lane.b32.xlu0 %v134, 109
    %v143 = vpop.permute.xlu0 %142
    %144 = vrot.lane.b32.xlu0 %v141, 109
    %v145 = vpop.permute.xlu0 %144
    %v146 = vrot.slane %v143, 4
    %v147 = vrot.slane %v145, 4
    %v148 = vsel %vm85, %v146, %v147
    %vm149 = vcmask 891904
    %v150 = vsel %vm149, %v143, %v148
    %153 = vst [vmem:[#allocation2 + $0x18] sm:$0x33] %v150
    %154 = vst.msk [vmem:[#allocation2 + $0x20] sm:$0x3] %vm92, %v145
    %v155 = vld [vmem:[%s0] sm:$0x3f]
    %v157 = vcombine.low %v155, %v155
    %v159 = vunpack.c.l.s4 1983009808
    %v160 = vunpack.c.0.s8 %v159
    %v161 = vlaneseq
    %v162 = vshrl.u32 %v161, 7
    %v163 = vsub.s32 %v160, %v162
    %v164 = vrot.slane %v157, %v163
    %v166 = vunpack.c.l.s4 1983009808
    %v167 = vunpack.c.0.s8 %v166
    %v168 = vlaneseq
    %v169 = vshrl.u32 %v168, 7
    %v170 = vsub.s32 %v167, %v169
    %v171 = vrot.slane %v155, %v170
    %172 = vrot.lane.b32.xlu0 %v164, 93
    %v173 = vpop.permute.xlu0 %172
    %174 = vrot.lane.b32.xlu0 %v171, 93
    %v175 = vpop.permute.xlu0 %174
    %v176 = vrot.slane %v173, 4
    %v177 = vrot.slane %v175, 4
    %v178 = vsel %vm85, %v176, %v177
    %vm179 = vcmask 760832
    %v180 = vsel %vm179, %v173, %v178
    %183 = vst [vmem:[#allocation2 + $0x18] sm:$0xcc] %v180
    %184 = vst.msk [vmem:[#allocation2 + $0x20] sm:$0xc] %vm123, %v175
    %v185 = vld [vmem:[%s0] sm:$0x3f]
    %v187 = vcombine.high %v185, %v185
    %v189 = vunpack.c.l.s4 1983009808
    %v190 = vunpack.c.0.s8 %v189
    %v191 = vlaneseq
    %v192 = vshrl.u32 %v191, 7
    %v193 = vsub.s32 %v190, %v192
    %v194 = vrot.slane %v185, %v193
    %v196 = vunpack.c.l.s4 1983009808
    %v197 = vunpack.c.0.s8 %v196
    %v198 = vlaneseq
    %v199 = vshrl.u32 %v198, 7
    %v200 = vsub.s32 %v197, %v199
    %v201 = vrot.slane %v187, %v200
    %202 = vrot.lane.b32.xlu0 %v194, 92
    %v203 = vpop.permute.xlu0 %202
    %204 = vrot.lane.b32.xlu0 %v201, 92
    %v205 = vpop.permute.xlu0 %204
    %v206 = vrot.slane %v203, 4
    %v207 = vrot.slane %v205, 4
    %v208 = vsel %vm85, %v206, %v207
    %vm209 = vcmask 752640
    %v210 = vsel %vm209, %v203, %v208
    %213 = vst [vmem:[#allocation2 + $0x30] sm:$0x33] %v210
    %214 = vst.msk [vmem:[#allocation2 + $0x38] sm:$0x3] %vm92, %v205
    %v215 = vld [vmem:[%s0] sm:$0x3f]
    %v217 = vcombine.low %v215, %v215
    %v219 = vunpack.c.l.s4 1983009808
    %v220 = vunpack.c.0.s8 %v219
    %v221 = vlaneseq
    %v222 = vshrl.u32 %v221, 7
    %v223 = vsub.s32 %v220, %v222
    %v224 = vrot.slane %v217, %v223
    %v226 = vunpack.c.l.s4 1983009808
    %v227 = vunpack.c.0.s8 %v226
    %v228 = vlaneseq
    %v229 = vshrl.u32 %v228, 7
    %v230 = vsub.s32 %v227, %v229
    %v231 = vrot.slane %v215, %v230
    %232 = vrot.lane.b32.xlu0 %v224, 91
    %v233 = vpop.permute.xlu0 %232
    %234 = vrot.lane.b32.xlu0 %v231, 91
    %v235 = vpop.permute.xlu0 %234
    %v236 = vrot.slane %v233, 4
    %v237 = vrot.slane %v235, 4
    %v238 = vsel %vm85, %v236, %v237
    %vm239 = vcmask 744448
    %v240 = vsel %vm239, %v233, %v238
    %243 = vst [vmem:[#allocation2 + $0x30] sm:$0xcc] %v240
    %244 = vst.msk [vmem:[#allocation2 + $0x38] sm:$0xc] %vm123, %v235
    %v245 = vld [vmem:[%s0] sm:$0x3f]
    %v247 = vcombine.high %v245, %v245
    %v249 = vunpack.c.l.s4 1983009808
    %v250 = vunpack.c.0.s8 %v249
    %v251 = vlaneseq
    %v252 = vshrl.u32 %v251, 7
    %v253 = vsub.s32 %v250, %v252
    %v254 = vrot.slane %v245, %v253
    %v256 = vunpack.c.l.s4 1983009808
    %v257 = vunpack.c.0.s8 %v256
    %v258 = vlaneseq
    %v259 = vshrl.u32 %v258, 7
    %v260 = vsub.s32 %v257, %v259
    %v261 = vrot.slane %v247, %v260
    %262 = vrot.lane.b32.xlu0 %v254, 75
    %v263 = vpop.permute.xlu0 %262
    %264 = vrot.lane.b32.xlu0 %v261, 75
    %v265 = vpop.permute.xlu0 %264
    %v266 = vrot.slane %v263, 4
    %v267 = vrot.slane %v265, 4
    %v268 = vsel %vm85, %v266, %v267
    %vm269 = vcmask 613376
    %v270 = vsel %vm269, %v263, %v268
    %273 = vst [vmem:[#allocation2 + $0x48] sm:$0x33] %v270
    %274 = vst.msk [vmem:[#allocation2 + $0x50] sm:$0x3] %vm92, %v265
    %v275 = vld [vmem:[%s0] sm:$0x3f]
    %v277 = vcombine.low %v275, %v275
    %v279 = vunpack.c.l.s4 1983009808
    %v280 = vunpack.c.0.s8 %v279
    %v281 = vlaneseq
    %v282 = vshrl.u32 %v281, 7
    %v283 = vsub.s32 %v280, %v282
    %v284 = vrot.slane %v277, %v283
    %v286 = vunpack.c.l.s4 1983009808
    %v287 = vunpack.c.0.s8 %v286
    %v288 = vlaneseq
    %v289 = vshrl.u32 %v288, 7
    %v290 = vsub.s32 %v287, %v289
    %v291 = vrot.slane %v275, %v290
    %292 = vrot.lane.b32.xlu0 %v284, 74
    %v293 = vpop.permute.xlu0 %292
    %294 = vrot.lane.b32.xlu0 %v291, 74
    %v295 = vpop.permute.xlu0 %294
    %v296 = vrot.slane %v293, 4
    %v297 = vrot.slane %v295, 4
    %v298 = vsel %vm85, %v296, %v297
    %vm299 = vcmask 605184
    %v300 = vsel %vm299, %v293, %v298
    %303 = vst [vmem:[#allocation2 + $0x48] sm:$0xcc] %v300
    %304 = vst.msk [vmem:[#allocation2 + $0x50] sm:$0xc] %vm123, %v295
    %v305 = vld [vmem:[%s0] sm:$0x3f]
    %v307 = vcombine.high %v305, %v305
    %v309 = vunpack.c.l.s4 1983009808
    %v310 = vunpack.c.0.s8 %v309
    %v311 = vlaneseq
    %v312 = vshrl.u32 %v311, 7
    %v313 = vsub.s32 %v310, %v312
    %v314 = vrot.slane %v305, %v313
    %v316 = vunpack.c.l.s4 1983009808
    %v317 = vunpack.c.0.s8 %v316
    %v318 = vlaneseq
    %v319 = vshrl.u32 %v318, 7
    %v320 = vsub.s32 %v317, %v319
    %v321 = vrot.slane %v307, %v320
    %322 = vrot.lane.b32.xlu0 %v314, 73
    %v323 = vpop.permute.xlu0 %322
    %324 = vrot.lane.b32.xlu0 %v321, 73
    %v325 = vpop.permute.xlu0 %324
    %v326 = vrot.slane %v323, 4
    %v327 = vrot.slane %v325, 4
    %v328 = vsel %vm85, %v326, %v327
    %vm329 = vcmask 596992
    %v330 = vsel %vm329, %v323, %v328
    %333 = vst [vmem:[#allocation2 + $0x60] sm:$0x33] %v330
    %334 = vst.msk [vmem:[#allocation2 + $0x68] sm:$0x3] %vm92, %v325
    %s335 = scalar_lea.vmem %s0, 6
    %v336 = vld [vmem:[%s335] sm:$0x3f]
    %v338 = vcombine.high %v336, %v336
    %v340 = vunpack.c.l.s4 1983009808
    %v341 = vunpack.c.0.s8 %v340
    %v342 = vlaneseq
    %v343 = vshrl.u32 %v342, 7
    %v344 = vsub.s32 %v341, %v343
    %v345 = vrot.slane %v336, %v344
    %v347 = vunpack.c.l.s4 1983009808
    %v348 = vunpack.c.0.s8 %v347
    %v349 = vlaneseq
    %v350 = vshrl.u32 %v349, 7
    %v351 = vsub.s32 %v348, %v350
    %v352 = vrot.slane %v338, %v351
    %353 = vrot.lane.b32.xlu0 %v345, 111
    %v354 = vpop.permute.xlu0 %353
    %355 = vrot.lane.b32.xlu0 %v352, 111
    %v356 = vpop.permute.xlu0 %355
    %v357 = vrot.slane %v354, 4
    %v358 = vrot.slane %v356, 4
    %v359 = vsel %vm85, %v357, %v358
    %v360 = vsel %vm87, %v354, %v359
    %363 = vst [vmem:[#allocation2 + $0xc] sm:$0x33] %v360
    %364 = vst.msk [vmem:[#allocation2 + $0x14] sm:$0x3] %vm92, %v356
    %v365 = vld [vmem:[%s335] sm:$0x3f]
    %v367 = vcombine.low %v365, %v365
    %v369 = vunpack.c.l.s4 1983009808
    %v370 = vunpack.c.0.s8 %v369
    %v371 = vlaneseq
    %v372 = vshrl.u32 %v371, 7
    %v373 = vsub.s32 %v370, %v372
    %v374 = vrot.slane %v367, %v373
    %v376 = vunpack.c.l.s4 1983009808
    %v377 = vunpack.c.0.s8 %v376
    %v378 = vlaneseq
    %v379 = vshrl.u32 %v378, 7
    %v380 = vsub.s32 %v377, %v379
    %v381 = vrot.slane %v365, %v380
    %382 = vrot.lane.b32.xlu0 %v374, 110
    %v383 = vpop.permute.xlu0 %382
    %384 = vrot.lane.b32.xlu0 %v381, 110
    %v385 = vpop.permute.xlu0 %384
    %v386 = vrot.slane %v383, 4
    %v387 = vrot.slane %v385, 4
    %v388 = vsel %vm85, %v386, %v387
    %v389 = vsel %vm118, %v383, %v388
    %392 = vst [vmem:[#allocation2 + $0xc] sm:$0xcc] %v389
    %393 = vst.msk [vmem:[#allocation2 + $0x14] sm:$0xc] %vm123, %v385
    %v394 = vld [vmem:[%s335] sm:$0x3f]
    %v396 = vcombine.high %v394, %v394
    %v398 = vunpack.c.l.s4 1983009808
    %v399 = vunpack.c.0.s8 %v398
    %v400 = vlaneseq
    %v401 = vshrl.u32 %v400, 7
    %v402 = vsub.s32 %v399, %v401
    %v403 = vrot.slane %v394, %v402
    %v405 = vunpack.c.l.s4 1983009808
    %v406 = vunpack.c.0.s8 %v405
    %v407 = vlaneseq
    %v408 = vshrl.u32 %v407, 7
    %v409 = vsub.s32 %v406, %v408
    %v410 = vrot.slane %v396, %v409
    %411 = vrot.lane.b32.xlu0 %v403, 109
    %v412 = vpop.permute.xlu0 %411
    %413 = vrot.lane.b32.xlu0 %v410, 109
    %v414 = vpop.permute.xlu0 %413
    %v415 = vrot.slane %v412, 4
    %v416 = vrot.slane %v414, 4
    %v417 = vsel %vm85, %v415, %v416
    %v418 = vsel %vm149, %v412, %v417
    %421 = vst [vmem:[#allocation2 + $0x24] sm:$0x33] %v418
    %422 = vst.msk [vmem:[#allocation2 + $0x2c] sm:$0x3] %vm92, %v414
    %v423 = vld [vmem:[%s335] sm:$0x3f]
    %v425 = vcombine.low %v423, %v423
    %v427 = vunpack.c.l.s4 1983009808
    %v428 = vunpack.c.0.s8 %v427
    %v429 = vlaneseq
    %v430 = vshrl.u32 %v429, 7
    %v431 = vsub.s32 %v428, %v430
    %v432 = vrot.slane %v425, %v431
    %v434 = vunpack.c.l.s4 1983009808
    %v435 = vunpack.c.0.s8 %v434
    %v436 = vlaneseq
    %v437 = vshrl.u32 %v436, 7
    %v438 = vsub.s32 %v435, %v437
    %v439 = vrot.slane %v423, %v438
    %440 = vrot.lane.b32.xlu0 %v432, 93
    %v441 = vpop.permute.xlu0 %440
    %442 = vrot.lane.b32.xlu0 %v439, 93
    %v443 = vpop.permute.xlu0 %442
    %v444 = vrot.slane %v441, 4
    %v445 = vrot.slane %v443, 4
    %v446 = vsel %vm85, %v444, %v445
    %v447 = vsel %vm179, %v441, %v446
    %450 = vst [vmem:[#allocation2 + $0x24] sm:$0xcc] %v447
    %451 = vst.msk [vmem:[#allocation2 + $0x2c] sm:$0xc] %vm123, %v443
    %v452 = vld [vmem:[%s335] sm:$0x3f]
    %v454 = vcombine.high %v452, %v452
    %v456 = vunpack.c.l.s4 1983009808
    %v457 = vunpack.c.0.s8 %v456
    %v458 = vlaneseq
    %v459 = vshrl.u32 %v458, 7
    %v460 = vsub.s32 %v457, %v459
    %v461 = vrot.slane %v452, %v460
    %v463 = vunpack.c.l.s4 1983009808
    %v464 = vunpack.c.0.s8 %v463
    %v465 = vlaneseq
    %v466 = vshrl.u32 %v465, 7
    %v467 = vsub.s32 %v464, %v466
    %v468 = vrot.slane %v454, %v467
    %469 = vrot.lane.b32.xlu0 %v461, 92
    %v470 = vpop.permute.xlu0 %469
    %471 = vrot.lane.b32.xlu0 %v468, 92
    %v472 = vpop.permute.xlu0 %471
    %v473 = vrot.slane %v470, 4
    %v474 = vrot.slane %v472, 4
    %v475 = vsel %vm85, %v473, %v474
    %v476 = vsel %vm209, %v470, %v475
    %479 = vst [vmem:[#allocation2 + $0x3c] sm:$0x33] %v476
    %480 = vst.msk [vmem:[#allocation2 + $0x44] sm:$0x3] %vm92, %v472
    %v481 = vld [vmem:[%s335] sm:$0x3f]
    %v483 = vcombine.low %v481, %v481
    %v485 = vunpack.c.l.s4 1983009808
    %v486 = vunpack.c.0.s8 %v485
    %v487 = vlaneseq
    %v488 = vshrl.u32 %v487, 7
    %v489 = vsub.s32 %v486, %v488
    %v490 = vrot.slane %v483, %v489
    %v492 = vunpack.c.l.s4 1983009808
    %v493 = vunpack.c.0.s8 %v492
    %v494 = vlaneseq
    %v495 = vshrl.u32 %v494, 7
    %v496 = vsub.s32 %v493, %v495
    %v497 = vrot.slane %v481, %v496
    %498 = vrot.lane.b32.xlu0 %v490, 91
    %v499 = vpop.permute.xlu0 %498
    %500 = vrot.lane.b32.xlu0 %v497, 91
    %v501 = vpop.permute.xlu0 %500
    %v502 = vrot.slane %v499, 4
    %v503 = vrot.slane %v501, 4
    %v504 = vsel %vm85, %v502, %v503
    %v505 = vsel %vm239, %v499, %v504
    %508 = vst [vmem:[#allocation2 + $0x3c] sm:$0xcc] %v505
    %509 = vst.msk [vmem:[#allocation2 + $0x44] sm:$0xc] %vm123, %v501
    %v510 = vld [vmem:[%s335] sm:$0x3f]
    %v512 = vcombine.high %v510, %v510
    %v514 = vunpack.c.l.s4 1983009808
    %v515 = vunpack.c.0.s8 %v514
    %v516 = vlaneseq
    %v517 = vshrl.u32 %v516, 7
    %v518 = vsub.s32 %v515, %v517
    %v519 = vrot.slane %v510, %v518
    %v521 = vunpack.c.l.s4 1983009808
    %v522 = vunpack.c.0.s8 %v521
    %v523 = vlaneseq
    %v524 = vshrl.u32 %v523, 7
    %v525 = vsub.s32 %v522, %v524
    %v526 = vrot.slane %v512, %v525
    %527 = vrot.lane.b32.xlu0 %v519, 75
    %v528 = vpop.permute.xlu0 %527
    %529 = vrot.lane.b32.xlu0 %v526, 75
    %v530 = vpop.permute.xlu0 %529
    %v531 = vrot.slane %v528, 4
    %v532 = vrot.slane %v530, 4
    %v533 = vsel %vm85, %v531, %v532
    %v534 = vsel %vm269, %v528, %v533
    %537 = vst [vmem:[#allocation2 + $0x54] sm:$0x33] %v534
    %538 = vst.msk [vmem:[#allocation2 + $0x5c] sm:$0x3] %vm92, %v530
    %v539 = vld [vmem:[%s335] sm:$0x3f]
    %v541 = vcombine.low %v539, %v539
    %v543 = vunpack.c.l.s4 1983009808
    %v544 = vunpack.c.0.s8 %v543
    %v545 = vlaneseq
    %v546 = vshrl.u32 %v545, 7
    %v547 = vsub.s32 %v544, %v546
    %v548 = vrot.slane %v541, %v547
    %v550 = vunpack.c.l.s4 1983009808
    %v551 = vunpack.c.0.s8 %v550
    %v552 = vlaneseq
    %v553 = vshrl.u32 %v552, 7
    %v554 = vsub.s32 %v551, %v553
    %v555 = vrot.slane %v539, %v554
    %556 = vrot.lane.b32.xlu0 %v548, 74
    %v557 = vpop.permute.xlu0 %556
    %558 = vrot.lane.b32.xlu0 %v555, 74
    %v559 = vpop.permute.xlu0 %558
    %v560 = vrot.slane %v557, 4
    %v561 = vrot.slane %v559, 4
    %v562 = vsel %vm85, %v560, %v561
    %v563 = vsel %vm299, %v557, %v562
    %566 = vst [vmem:[#allocation2 + $0x54] sm:$0xcc] %v563
    %567 = vst.msk [vmem:[#allocation2 + $0x5c] sm:$0xc] %vm123, %v559
    %v568 = vld [vmem:[%s335] sm:$0x3f]
    %v570 = vcombine.high %v568, %v568
    %v572 = vunpack.c.l.s4 1983009808
    %v573 = vunpack.c.0.s8 %v572
    %v574 = vlaneseq
    %v575 = vshrl.u32 %v574, 7
    %v576 = vsub.s32 %v573, %v575
    %v577 = vrot.slane %v568, %v576
    %v579 = vunpack.c.l.s4 1983009808
    %v580 = vunpack.c.0.s8 %v579
    %v581 = vlaneseq
    %v582 = vshrl.u32 %v581, 7
    %v583 = vsub.s32 %v580, %v582
    %v584 = vrot.slane %v570, %v583
    %585 = vrot.lane.b32.xlu0 %v577, 73
    %v586 = vpop.permute.xlu0 %585
    %587 = vrot.lane.b32.xlu0 %v584, 73
    %v588 = vpop.permute.xlu0 %587
    %v589 = vrot.slane %v586, 4
    %v590 = vrot.slane %v588, 4
    %v591 = vsel %vm85, %v589, %v590
    %v592 = vsel %vm329, %v586, %v591
    %595 = vst [vmem:[#allocation2 + $0x6c] sm:$0x33] %v592
    %596 = vst.msk [vmem:[#allocation2 + $0x74] sm:$0x3] %vm92, %v588
    %v597 = vld [vmem:[%s1] sm:$0xf]
    %v598 = vld [vmem:[#allocation2] sm:$0xff]
    %v599 = vld [vmem:[#allocation2 + $0x8] sm:$0xff]
    %v600 = vld [vmem:[#allocation2 + $0x10] sm:$0xff]
    %v601 = vld [vmem:[#allocation2 + $0x18] sm:$0xff]
    %v602 = vld [vmem:[#allocation2 + $0x20] sm:$0xff]
    %v603 = vld [vmem:[#allocation2 + $0x28] sm:$0xff]
    %v604 = vld [vmem:[#allocation2 + $0x30] sm:$0xff]
    %v605 = vld [vmem:[#allocation2 + $0x38] sm:$0xff]
    %v606 = vld [vmem:[#allocation2 + $0x40] sm:$0xff]
    %v607 = vld [vmem:[#allocation2 + $0x48] sm:$0xff]
    %v608 = vld [vmem:[#allocation2 + $0x50] sm:$0xff]
    %v609 = vld [vmem:[#allocation2 + $0x58] sm:$0xff]
    %v610 = vld [vmem:[#allocation2 + $0x60] sm:$0x33]
    %v611 = vld [vmem:[#allocation2 + $0x68] sm:$0x33]
    %v612 = vld [vmem:[#allocation2 + $0x70] sm:$0x33]
    %614 = vset.pattern.permute.xlu0 0
    %615 = vperm.xlu0 %614, %v25
    %v616 = vpop.permute.xlu0 %615
    %v633 = vunpack.c.l.b16 %v598
    %v634 = vunpack.c.h.b16 %v598
    %v635 = vunpack.c.l.b16 %v599
    %v636 = vunpack.c.h.b16 %v599
    %v637 = vunpack.c.l.b16 %v600
    %v638 = vunpack.c.h.b16 %v600
    %v639 = vunpack.c.l.b16 %v601
    %v640 = vunpack.c.h.b16 %v601
    %v641 = vunpack.c.l.b16 %v602
    %v642 = vunpack.c.h.b16 %v602
    %v643 = vunpack.c.l.b16 %v603
    %v644 = vunpack.c.h.b16 %v603
    %v645 = vunpack.c.l.b16 %v604
    %v646 = vunpack.c.h.b16 %v604
    %v647 = vunpack.c.l.b16 %v605
    %v648 = vunpack.c.h.b16 %v605
    %v649 = vunpack.c.l.b16 %v606
    %v650 = vunpack.c.h.b16 %v606
    %v651 = vunpack.c.l.b16 %v607
    %v652 = vunpack.c.h.b16 %v607
    %v653 = vunpack.c.l.b16 %v608
    %v654 = vunpack.c.h.b16 %v608
    %v655 = vunpack.c.l.b16 %v609
    %v656 = vunpack.c.h.b16 %v609
    %v657 = vunpack.c.l.b16 %v610
    %v658 = vunpack.c.h.b16 %v610
    %v659 = vunpack.c.l.b16 %v611
    %v660 = vunpack.c.h.b16 %v611
    %v661 = vunpack.c.l.b16 %v612
    %v662 = vunpack.c.h.b16 %v612
    %v663 = vpack.c.b16 %v639, %v633
    %v664 = vpack.c.b16 %v640, %v634
    %v665 = vpack.c.b16 %v641, %v635
    %v666 = vpack.c.b16 %v642, %v636
    %v667 = vpack.c.b16 %v643, %v637
    %v668 = vpack.c.b16 %v644, %v638
    %v669 = vpack.c.b16 %v651, %v645
    %v670 = vpack.c.b16 %v652, %v646
    %v671 = vpack.c.b16 %v653, %v647
    %v672 = vpack.c.b16 %v654, %v648
    %v673 = vpack.c.b16 %v655, %v649
    %v674 = vpack.c.b16 %v656, %v650
    %v675 = vpack.c.b16 %v657, %v657
    %v676 = vpack.c.b16 %v658, %v658
    %v677 = vpack.c.b16 %v659, %v659
    %v678 = vpack.c.b16 %v660, %v660
    %v679 = vpack.c.b16 %v661, %v661
    %v680 = vpack.c.b16 %v662, %v662
    %vm693 = vcmask 293888
    %v695 = vsel %vm693, %v597, 0
    %vm697 = vcmask 1041408
    %v699 = vsel %vm697, %v675, 0
    %v702 = vsel %vm697, %v676, 0
    %v705 = vsel %vm697, %v677, 0
    %v708 = vsel %vm697, %v678, 0
    %v711 = vsel %vm697, %v679, 0
    %v714 = vsel %vm697, %v680, 0
    %716 = vmatprep.subr.bf16.mxu0 0
    %717 = vmatpush1.bf16.msra.mxu0 0
    %718 = vmatprep.subr.bf16.mxu0 0
    %719 = vmatpush1.bf16.msra.mxu0 0
    %720 = vmatprep.subr.bf16.mxu0 0
    %721 = vmatpush1.bf16.msra.mxu0 0
    %722 = vmatprep.subr.bf16.mxu0 0
    %723 = vmatpush1.bf16.msra.mxu0 0
    %724 = vmatprep.subr.bf16.mxu0 0
    %725 = vmatpush1.bf16.msra.mxu0 0
    %726 = vmatprep.subr.bf16.mxu0 %v702
    %727 = vmatpush1.bf16.msra.mxu0 %v699
    %728 = vmatprep.subr.bf16.mxu0 %v670
    %729 = vmatpush1.bf16.msra.mxu0 %v669
    %730 = vmatprep.subr.bf16.mxu0 %v664
    %731 = vmatpush1.bf16.msra.mxu0 %v663
    %732 = vmatprep.subr.bf16.mxu0 0
    %733 = vmatpush2.bf16.msra.mxu0 0
    %734 = vmatprep.subr.bf16.mxu0 0
    %735 = vmatpush2.bf16.msra.mxu0 0
    %736 = vmatprep.subr.bf16.mxu0 0
    %737 = vmatpush2.bf16.msra.mxu0 0
    %738 = vmatprep.subr.bf16.mxu0 0
    %739 = vmatpush2.bf16.msra.mxu0 0
    %740 = vmatprep.subr.bf16.mxu0 0
    %741 = vmatpush2.bf16.msra.mxu0 0
    %742 = vmatprep.subr.bf16.mxu0 0
    %743 = vmatpush2.bf16.msra.mxu0 0
    %744 = vmatprep.subr.bf16.mxu0 0
    %745 = vmatpush2.bf16.msra.mxu0 0
    %746 = vmatprep.subr.bf16.mxu0 0
    %747 = vmatpush2.bf16.msra.mxu0 0
    %748 = vmatprep.mubr.bf16.mxu0 0
    %749 = vmatmul.mubr.bf16.gmra.mxu0 %v695
    %v750 = vpop.f32.mrf.mxu0
    %v751 = vadd.f32 %v616, %v750
    %v752 = vpop.f32.mrf.mxu0
    %v753 = vadd.f32 %v616, %v752
    %v754 = vpop.f32.mrf.mxu0
    %v755 = vpop.f32.mrf.mxu0
    %756 = vdwg.mxu0
    %757 = vmatprep.subr.bf16.mxu0 0
    %758 = vmatpush1.bf16.msra.mxu0 0
    %759 = vmatprep.subr.bf16.mxu0 0
    %760 = vmatpush1.bf16.msra.mxu0 0
    %761 = vmatprep.subr.bf16.mxu0 0
    %762 = vmatpush1.bf16.msra.mxu0 0
    %763 = vmatprep.subr.bf16.mxu0 0
    %764 = vmatpush1.bf16.msra.mxu0 0
    %765 = vmatprep.subr.bf16.mxu0 0
    %766 = vmatpush1.bf16.msra.mxu0 0
    %767 = vmatprep.subr.bf16.mxu0 %v708
    %768 = vmatpush1.bf16.msra.mxu0 %v705
    %769 = vmatprep.subr.bf16.mxu0 %v672
    %770 = vmatpush1.bf16.msra.mxu0 %v671
    %771 = vmatprep.subr.bf16.mxu0 %v666
    %772 = vmatpush1.bf16.msra.mxu0 %v665
    %773 = vmatprep.subr.bf16.mxu0 0
    %774 = vmatpush2.bf16.msra.mxu0 0
    %775 = vmatprep.subr.bf16.mxu0 0
    %776 = vmatpush2.bf16.msra.mxu0 0
    %777 = vmatprep.subr.bf16.mxu0 0
    %778 = vmatpush2.bf16.msra.mxu0 0
    %779 = vmatprep.subr.bf16.mxu0 0
    %780 = vmatpush2.bf16.msra.mxu0 0
    %781 = vmatprep.subr.bf16.mxu0 0
    %782 = vmatpush2.bf16.msra.mxu0 0
    %783 = vmatprep.subr.bf16.mxu0 0
    %784 = vmatpush2.bf16.msra.mxu0 0
    %785 = vmatprep.subr.bf16.mxu0 0
    %786 = vmatpush2.bf16.msra.mxu0 0
    %787 = vmatprep.subr.bf16.mxu0 0
    %788 = vmatpush2.bf16.msra.mxu0 0
    %789 = vmatprep.mubr.bf16.mxu0 0
    %790 = vmatmul.mubr.bf16.gmra.mxu0 %v695
    %v791 = vpop.f32.mrf.mxu0
    %v792 = vadd.f32 %v616, %v791
    %v793 = vpop.f32.mrf.mxu0
    %v794 = vadd.f32 %v616, %v793
    %v795 = vpop.f32.mrf.mxu0
    %v796 = vpop.f32.mrf.mxu0
    %797 = vdwg.mxu0
    %798 = vmatprep.subr.bf16.mxu0 0
    %799 = vmatpush1.bf16.msra.mxu0 0
    %800 = vmatprep.subr.bf16.mxu0 0
    %801 = vmatpush1.bf16.msra.mxu0 0
    %802 = vmatprep.subr.bf16.mxu0 0
    %803 = vmatpush1.bf16.msra.mxu0 0
    %804 = vmatprep.subr.bf16.mxu0 0
    %805 = vmatpush1.bf16.msra.mxu0 0
    %806 = vmatprep.subr.bf16.mxu0 0
    %807 = vmatpush1.bf16.msra.mxu0 0
    %808 = vmatprep.subr.bf16.mxu0 %v714
    %809 = vmatpush1.bf16.msra.mxu0 %v711
    %810 = vmatprep.subr.bf16.mxu0 %v674
    %811 = vmatpush1.bf16.msra.mxu0 %v673
    %812 = vmatprep.subr.bf16.mxu0 %v668
    %813 = vmatpush1.bf16.msra.mxu0 %v667
    %814 = vmatprep.subr.bf16.mxu0 0
    %815 = vmatpush2.bf16.msra.mxu0 0
    %816 = vmatprep.subr.bf16.mxu0 0
    %817 = vmatpush2.bf16.msra.mxu0 0
    %818 = vmatprep.subr.bf16.mxu0 0
    %819 = vmatpush2.bf16.msra.mxu0 0
    %820 = vmatprep.subr.bf16.mxu0 0
    %821 = vmatpush2.bf16.msra.mxu0 0
    %822 = vmatprep.subr.bf16.mxu0 0
    %823 = vmatpush2.bf16.msra.mxu0 0
    %824 = vmatprep.subr.bf16.mxu0 0
    %825 = vmatpush2.bf16.msra.mxu0 0
    %826 = vmatprep.subr.bf16.mxu0 0
    %827 = vmatpush2.bf16.msra.mxu0 0
    %828 = vmatprep.subr.bf16.mxu0 0
    %829 = vmatpush2.bf16.msra.mxu0 0
    %830 = vmatprep.mubr.bf16.mxu0 0
    %831 = vmatmul.mubr.bf16.gmra.mxu0 %v695
    %v832 = vpop.f32.mrf.mxu0
    %v833 = vadd.f32 %v616, %v832
    %v834 = vpop.f32.mrf.mxu0
    %v835 = vadd.f32 %v616, %v834
    %v836 = vpop.f32.mrf.mxu0
    %v837 = vpop.f32.mrf.mxu0
    %838 = vdwg.mxu0
    %v839 = vmax.f32 %v751, 0.0
    %v840 = vmax.f32 %v753, 0.0
    %v841 = vmax.f32 %v792, 0.0
    %v842 = vmax.f32 %v794, 0.0
    %v843 = vmax.f32 %v833, 0.0
    %v844 = vmax.f32 %v835, 0.0
    %v846 = vlaneseq
    %v847 = vshrl.u32 %v846, 7
    %v848 = vsub.s32 0, %v847
    %v849 = vrot.slane %v27, %v848
    %v850 = vlaneseq
    %v851 = vshrl.u32 %v850, 7
    %v852 = vsub.s32 1, %v851
    %v853 = vrot.slane %v27, %v852
    %v854 = vlaneseq
    %v855 = vshrl.u32 %v854, 7
    %v856 = vsub.s32 2, %v855
    %v857 = vrot.slane %v27, %v856
    %v861 = vmul.f32 %v839, %v849
    %v862 = vmul.f32 %v840, %v853
    %v863 = vmul.f32 %v841, %v857
    %v864 = vpack.c.bf16 %v861, %v861
    %v865 = vpack.c.bf16 %v862, %v862
    %v866 = vpack.c.bf16 %v863, %v863
    %v870 = vunpack.c.l.b16 %v864
    %v871 = vunpack.c.l.b16 %v865
    %v872 = vunpack.c.l.b16 %v866
    %v873 = vpack.c.b16 %v871, %v870
    %v874 = vpack.c.b16 %v872, %v872
    %877 = vst [vmem:[#allocation4 + $0x4] sm:$0xff] %v873
    %vm878 = vcmask 257024
    %879 = vst.msk [vmem:[#allocation4 + $0xc] sm:$0xf] %vm878, %v874
    %v880 = vmul.f32 %v842, %v849
    %v881 = vmul.f32 %v843, %v853
    %v882 = vmul.f32 %v844, %v857
    %v883 = vpack.c.bf16 %v880, %v880
    %v884 = vpack.c.bf16 %v881, %v881
    %v885 = vpack.c.bf16 %v882, %v882
    %v889 = vunpack.c.l.b16 %v883
    %v890 = vunpack.c.l.b16 %v884
    %v891 = vunpack.c.l.b16 %v885
    %v892 = vpack.c.b16 %v890, %v889
    %v893 = vpack.c.b16 %v891, %v891
    %896 = vst [vmem:[#allocation4 + $0x14] sm:$0xff] %v892
    %897 = vst.msk [vmem:[#allocation4 + $0x1c] sm:$0xf] %vm878, %v893
    %v898 = vld [vmem:[#allocation4] sm:$0xff]
    %v899 = vld [vmem:[#allocation4 + $0x8] sm:$0xff]
    %902 = vrot.lane.b32.xlu0 %v898, 19
    %v903 = vpop.permute.xlu0 %902
    %904 = vrot.lane.b32.xlu0 %v899, 19
    %v905 = vpop.permute.xlu0 %904
    %v906 = vrot.slane %v903, 4
    %v907 = vrot.slane %v905, 4
    %v908 = vsel %vm85, %v906, %v907
    %vm909 = vcmask 154624
    %v910 = vsel %vm909, %v903, %v908
    %v911 = vsel %vm909, %v905, %v907
    %914 = vst [vmem:[#allocation3] sm:$0xff] %v910
    %915 = vst.msk [vmem:[#allocation3 + $0x8] sm:$0xf] %vm878, %v911
    %v916 = vld [vmem:[#allocation4] sm:$0xff]
    %v917 = vld [vmem:[#allocation4 + $0x8] sm:$0xff]
    %920 = vrot.lane.b32.xlu0 %v916, 18
    %v921 = vpop.permute.xlu0 %920
    %922 = vrot.lane.b32.xlu0 %v917, 18
    %v923 = vpop.permute.xlu0 %922
    %v924 = vrot.slane %v921, 4
    %v925 = vrot.slane %v923, 4
    %v926 = vsel %vm85, %v924, %v925
    %vm927 = vcmask 146432
    %v928 = vsel %vm927, %v921, %v926
    %v929 = vsel %vm927, %v923, %v925
    %932 = vst [vmem:[#allocation3 + $0x18] sm:$0xff] %v928
    %933 = vst.msk [vmem:[#allocation3 + $0x20] sm:$0xf] %vm878, %v929
    %v934 = vld [vmem:[#allocation4] sm:$0xff]
    %v935 = vld [vmem:[#allocation4 + $0x8] sm:$0xff]
    %938 = vrot.lane.b32.xlu0 %v934, 17
    %v939 = vpop.permute.xlu0 %938
    %940 = vrot.lane.b32.xlu0 %v935, 17
    %v941 = vpop.permute.xlu0 %940
    %v942 = vrot.slane %v939, 4
    %v943 = vrot.slane %v941, 4
    %v944 = vsel %vm85, %v942, %v943
    %vm945 = vcmask 138240
    %v946 = vsel %vm945, %v939, %v944
    %v947 = vsel %vm945, %v941, %v943
    %950 = vst [vmem:[#allocation3 + $0x30] sm:$0xff] %v946
    %951 = vst.msk [vmem:[#allocation3 + $0x38] sm:$0xf] %vm878, %v947
    %v952 = vld [vmem:[#allocation4] sm:$0xff]
    %v953 = vld [vmem:[#allocation4 + $0x8] sm:$0xff]
    %956 = vrot.lane.b32.xlu0 %v952, 1
    %v957 = vpop.permute.xlu0 %956
    %958 = vrot.lane.b32.xlu0 %v953, 1
    %v959 = vpop.permute.xlu0 %958
    %v960 = vrot.slane %v957, 4
    %v961 = vrot.slane %v959, 4
    %v962 = vsel %vm85, %v960, %v961
    %vm963 = vcmask 7168
    %v964 = vsel %vm963, %v957, %v962
    %v965 = vsel %vm963, %v959, %v961
    %968 = vst [vmem:[#allocation3 + $0x48] sm:$0xff] %v964
    %969 = vst.msk [vmem:[#allocation3 + $0x50] sm:$0xf] %vm878, %v965
    %v970 = vld [vmem:[#allocation4 + $0x4] sm:$0xff]
    %v971 = vld [vmem:[#allocation4 + $0xc] sm:$0xf]
    %972 = vst [vmem:[#allocation3 + $0x60] sm:$0xff] %v970
    %973 = vst.msk [vmem:[#allocation3 + $0x68] sm:$0xf] %vm878, %v971
    %v974 = vld [vmem:[#allocation4 + $0x4] sm:$0xff]
    %v975 = vld [vmem:[#allocation4 + $0xc] sm:$0xf]
    %978 = vrot.lane.b32.xlu0 %v974, 127
    %v979 = vpop.permute.xlu0 %978
    %980 = vrot.lane.b32.xlu0 %v975, 127
    %v981 = vpop.permute.xlu0 %980
    %v982 = vrot.slane %v979, 4
    %v983 = vrot.slane %v981, 4
    %v984 = vsel %vm85, %v982, %v983
    %vm985 = vcmask 1039360
    %v986 = vsel %vm985, %v979, %v984
    %989 = vst [vmem:[#allocation3 + $0x78] sm:$0xff] %v986
    %990 = vst.msk [vmem:[#allocation3 + $0x80] sm:$0xf] %vm878, %v981
    %v991 = vld [vmem:[#allocation4 + $0x4] sm:$0xff]
    %v992 = vld [vmem:[#allocation4 + $0xc] sm:$0xf]
    %995 = vrot.lane.b32.xlu0 %v991, 111
    %v996 = vpop.permute.xlu0 %995
    %997 = vrot.lane.b32.xlu0 %v992, 111
    %v998 = vpop.permute.xlu0 %997
    %v999 = vrot.slane %v996, 4
    %v1000 = vrot.slane %v998, 4
    %v1001 = vsel %vm85, %v999, %v1000
    %v1002 = vsel %vm87, %v996, %v1001
    %1005 = vst [vmem:[#allocation3 + $0x90] sm:$0xff] %v1002
    %1006 = vst.msk [vmem:[#allocation3 + $0x98] sm:$0xf] %vm878, %v998
    %v1007 = vld [vmem:[#allocation4 + $0x4] sm:$0xff]
    %v1008 = vld [vmem:[#allocation4 + $0xc] sm:$0xf]
    %1011 = vrot.lane.b32.xlu0 %v1007, 110
    %v1012 = vpop.permute.xlu0 %1011
    %1013 = vrot.lane.b32.xlu0 %v1008, 110
    %v1014 = vpop.permute.xlu0 %1013
    %v1015 = vrot.slane %v1012, 4
    %v1016 = vrot.slane %v1014, 4
    %v1017 = vsel %vm85, %v1015, %v1016
    %v1018 = vsel %vm118, %v1012, %v1017
    %1021 = vst [vmem:[#allocation3 + $0xa8] sm:$0xff] %v1018
    %1022 = vst.msk [vmem:[#allocation3 + $0xb0] sm:$0xf] %vm878, %v1014
    %v1023 = vld [vmem:[#allocation4 + $0x4] sm:$0xff]
    %v1024 = vld [vmem:[#allocation4 + $0xc] sm:$0xf]
    %1027 = vrot.lane.b32.xlu0 %v1023, 109
    %v1028 = vpop.permute.xlu0 %1027
    %1029 = vrot.lane.b32.xlu0 %v1024, 109
    %v1030 = vpop.permute.xlu0 %1029
    %v1031 = vrot.slane %v1028, 4
    %v1032 = vrot.slane %v1030, 4
    %v1033 = vsel %vm85, %v1031, %v1032
    %v1034 = vsel %vm149, %v1028, %v1033
    %1037 = vst [vmem:[#allocation3 + $0xc0] sm:$0xff] %v1034
    %1038 = vst.msk [vmem:[#allocation3 + $0xc8] sm:$0xf] %vm878, %v1030
    %v1039 = vld [vmem:[#allocation4 + $0x10] sm:$0xff]
    %v1040 = vld [vmem:[#allocation4 + $0x18] sm:$0xff]
    %1043 = vrot.lane.b32.xlu0 %v1039, 19
    %v1044 = vpop.permute.xlu0 %1043
    %1045 = vrot.lane.b32.xlu0 %v1040, 19
    %v1046 = vpop.permute.xlu0 %1045
    %v1047 = vrot.slane %v1044, 4
    %v1048 = vrot.slane %v1046, 4
    %v1049 = vsel %vm85, %v1047, %v1048
    %v1050 = vsel %vm909, %v1044, %v1049
    %v1051 = vsel %vm909, %v1046, %v1048
    %1054 = vst [vmem:[#allocation3 + $0xc] sm:$0xff] %v1050
    %1055 = vst.msk [vmem:[#allocation3 + $0x14] sm:$0xf] %vm878, %v1051
    %v1056 = vld [vmem:[#allocation4 + $0x10] sm:$0xff]
    %v1057 = vld [vmem:[#allocation4 + $0x18] sm:$0xff]
    %1060 = vrot.lane.b32.xlu0 %v1056, 18
    %v1061 = vpop.permute.xlu0 %1060
    %1062 = vrot.lane.b32.xlu0 %v1057, 18
    %v1063 = vpop.permute.xlu0 %1062
    %v1064 = vrot.slane %v1061, 4
    %v1065 = vrot.slane %v1063, 4
    %v1066 = vsel %vm85, %v1064, %v1065
    %v1067 = vsel %vm927, %v1061, %v1066
    %v1068 = vsel %vm927, %v1063, %v1065
    %1071 = vst [vmem:[#allocation3 + $0x24] sm:$0xff] %v1067
    %1072 = vst.msk [vmem:[#allocation3 + $0x2c] sm:$0xf] %vm878, %v1068
    %v1073 = vld [vmem:[#allocation4 + $0x10] sm:$0xff]
    %v1074 = vld [vmem:[#allocation4 + $0x18] sm:$0xff]
    %1077 = vrot.lane.b32.xlu0 %v1073, 17
    %v1078 = vpop.permute.xlu0 %1077
    %1079 = vrot.lane.b32.xlu0 %v1074, 17
    %v1080 = vpop.permute.xlu0 %1079
    %v1081 = vrot.slane %v1078, 4
    %v1082 = vrot.slane %v1080, 4
    %v1083 = vsel %vm85, %v1081, %v1082
    %v1084 = vsel %vm945, %v1078, %v1083
    %v1085 = vsel %vm945, %v1080, %v1082
    %1088 = vst [vmem:[#allocation3 + $0x3c] sm:$0xff] %v1084
    %1089 = vst.msk [vmem:[#allocation3 + $0x44] sm:$0xf] %vm878, %v1085
    %v1090 = vld [vmem:[#allocation4 + $0x10] sm:$0xff]
    %v1091 = vld [vmem:[#allocation4 + $0x18] sm:$0xff]
    %1094 = vrot.lane.b32.xlu0 %v1090, 1
    %v1095 = vpop.permute.xlu0 %1094
    %1096 = vrot.lane.b32.xlu0 %v1091, 1
    %v1097 = vpop.permute.xlu0 %1096
    %v1098 = vrot.slane %v1095, 4
    %v1099 = vrot.slane %v1097, 4
    %v1100 = vsel %vm85, %v1098, %v1099
    %v1101 = vsel %vm963, %v1095, %v1100
    %v1102 = vsel %vm963, %v1097, %v1099
    %1105 = vst [vmem:[#allocation3 + $0x54] sm:$0xff] %v1101
    %1106 = vst.msk [vmem:[#allocation3 + $0x5c] sm:$0xf] %vm878, %v1102
    %v1107 = vld [vmem:[#allocation4 + $0x14] sm:$0xff]
    %v1108 = vld [vmem:[#allocation4 + $0x1c] sm:$0xf]
    %1109 = vst [vmem:[#allocation3 + $0x6c] sm:$0xff] %v1107
    %1110 = vst.msk [vmem:[#allocation3 + $0x74] sm:$0xf] %vm878, %v1108
    %v1111 = vld [vmem:[#allocation4 + $0x14] sm:$0xff]
    %v1112 = vld [vmem:[#allocation4 + $0x1c] sm:$0xf]
    %1115 = vrot.lane.b32.xlu0 %v1111, 127
    %v1116 = vpop.permute.xlu0 %1115
    %1117 = vrot.lane.b32.xlu0 %v1112, 127
    %v1118 = vpop.permute.xlu0 %1117
    %v1119 = vrot.slane %v1116, 4
    %v1120 = vrot.slane %v1118, 4
    %v1121 = vsel %vm85, %v1119, %v1120
    %v1122 = vsel %vm985, %v1116, %v1121
    %1125 = vst [vmem:[#allocation3 + $0x84] sm:$0xff] %v1122
    %1126 = vst.msk [vmem:[#allocation3 + $0x8c] sm:$0xf] %vm878, %v1118
    %v1127 = vld [vmem:[#allocation4 + $0x14] sm:$0xff]
    %v1128 = vld [vmem:[#allocation4 + $0x1c] sm:$0xf]
    %1131 = vrot.lane.b32.xlu0 %v1127, 111
    %v1132 = vpop.permute.xlu0 %1131
    %1133 = vrot.lane.b32.xlu0 %v1128, 111
    %v1134 = vpop.permute.xlu0 %1133
    %v1135 = vrot.slane %v1132, 4
    %v1136 = vrot.slane %v1134, 4
    %v1137 = vsel %vm85, %v1135, %v1136
    %v1138 = vsel %vm87, %v1132, %v1137
    %1141 = vst [vmem:[#allocation3 + $0x9c] sm:$0xff] %v1138
    %1142 = vst.msk [vmem:[#allocation3 + $0xa4] sm:$0xf] %vm878, %v1134
    %v1143 = vld [vmem:[#allocation4 + $0x14] sm:$0xff]
    %v1144 = vld [vmem:[#allocation4 + $0x1c] sm:$0xf]
    %1147 = vrot.lane.b32.xlu0 %v1143, 110
    %v1148 = vpop.permute.xlu0 %1147
    %1149 = vrot.lane.b32.xlu0 %v1144, 110
    %v1150 = vpop.permute.xlu0 %1149
    %v1151 = vrot.slane %v1148, 4
    %v1152 = vrot.slane %v1150, 4
    %v1153 = vsel %vm85, %v1151, %v1152
    %v1154 = vsel %vm118, %v1148, %v1153
    %1157 = vst [vmem:[#allocation3 + $0xb4] sm:$0xff] %v1154
    %1158 = vst.msk [vmem:[#allocation3 + $0xbc] sm:$0xf] %vm878, %v1150
    %v1159 = vld [vmem:[#allocation4 + $0x14] sm:$0xff]
    %v1160 = vld [vmem:[#allocation4 + $0x1c] sm:$0xf]
    %1163 = vrot.lane.b32.xlu0 %v1159, 109
    %v1164 = vpop.permute.xlu0 %1163
    %1165 = vrot.lane.b32.xlu0 %v1160, 109
    %v1166 = vpop.permute.xlu0 %1165
    %v1167 = vrot.slane %v1164, 4
    %v1168 = vrot.slane %v1166, 4
    %v1169 = vsel %vm85, %v1167, %v1168
    %v1170 = vsel %vm149, %v1164, %v1169
    %1173 = vst [vmem:[#allocation3 + $0xcc] sm:$0xff] %v1170
    %1174 = vst.msk [vmem:[#allocation3 + $0xd4] sm:$0xf] %vm878, %v1166
    %v1175 = vld [vmem:[%s3] sm:$0xf]
    %v1176 = vld [vmem:[#allocation3] sm:$0xff]
    %v1177 = vld [vmem:[#allocation3 + $0x8] sm:$0xff]
    %v1178 = vld [vmem:[#allocation3 + $0x10] sm:$0xff]
    %v1179 = vld [vmem:[#allocation3 + $0x18] sm:$0xff]
    %v1180 = vld [vmem:[#allocation3 + $0x20] sm:$0xff]
    %v1181 = vld [vmem:[#allocation3 + $0x28] sm:$0xff]
    %v1182 = vld [vmem:[#allocation3 + $0x30] sm:$0xff]
    %v1183 = vld [vmem:[#allocation3 + $0x38] sm:$0xff]
    %v1184 = vld [vmem:[#allocation3 + $0x40] sm:$0xff]
    %v1185 = vld [vmem:[#allocation3 + $0x48] sm:$0xff]
    %v1186 = vld [vmem:[#allocation3 + $0x50] sm:$0xff]
    %v1187 = vld [vmem:[#allocation3 + $0x58] sm:$0xff]
    %v1188 = vld [vmem:[#allocation3 + $0x60] sm:$0xff]
    %v1189 = vld [vmem:[#allocation3 + $0x68] sm:$0xff]
    %v1190 = vld [vmem:[#allocation3 + $0x70] sm:$0xff]
    %v1191 = vld [vmem:[#allocation3 + $0x78] sm:$0xff]
    %v1192 = vld [vmem:[#allocation3 + $0x80] sm:$0xff]
    %v1193 = vld [vmem:[#allocation3 + $0x88] sm:$0xff]
    %v1194 = vld [vmem:[#allocation3 + $0x90] sm:$0xff]
    %v1195 = vld [vmem:[#allocation3 + $0x98] sm:$0xff]
    %v1196 = vld [vmem:[#allocation3 + $0xa0] sm:$0xff]
    %v1197 = vld [vmem:[#allocation3 + $0xa8] sm:$0xff]
    %v1198 = vld [vmem:[#allocation3 + $0xb0] sm:$0xff]
    %v1199 = vld [vmem:[#allocation3 + $0xb8] sm:$0xff]
    %v1200 = vld [vmem:[#allocation3 + $0xc0] sm:$0xff]
    %v1201 = vld [vmem:[#allocation3 + $0xc8] sm:$0xff]
    %v1202 = vld [vmem:[#allocation3 + $0xd0] sm:$0xff]
    %1204 = vset.pattern.permute.xlu0 0
    %1205 = vperm.xlu0 %1204, %v26
    %v1206 = vpop.permute.xlu0 %1205
    %v1235 = vunpack.c.l.b16 %v1176
    %v1236 = vunpack.c.h.b16 %v1176
    %v1237 = vunpack.c.l.b16 %v1177
    %v1238 = vunpack.c.h.b16 %v1177
    %v1239 = vunpack.c.l.b16 %v1178
    %v1240 = vunpack.c.h.b16 %v1178
    %v1241 = vunpack.c.l.b16 %v1179
    %v1242 = vunpack.c.h.b16 %v1179
    %v1243 = vunpack.c.l.b16 %v1180
    %v1244 = vunpack.c.h.b16 %v1180
    %v1245 = vunpack.c.l.b16 %v1181
    %v1246 = vunpack.c.h.b16 %v1181
    %v1247 = vunpack.c.l.b16 %v1182
    %v1248 = vunpack.c.h.b16 %v1182
    %v1249 = vunpack.c.l.b16 %v1183
    %v1250 = vunpack.c.h.b16 %v1183
    %v1251 = vunpack.c.l.b16 %v1184
    %v1252 = vunpack.c.h.b16 %v1184
    %v1253 = vunpack.c.l.b16 %v1185
    %v1254 = vunpack.c.h.b16 %v1185
    %v1255 = vunpack.c.l.b16 %v1186
    %v1256 = vunpack.c.h.b16 %v1186
    %v1257 = vunpack.c.l.b16 %v1187
    %v1258 = vunpack.c.h.b16 %v1187
    %v1259 = vunpack.c.l.b16 %v1188
    %v1260 = vunpack.c.h.b16 %v1188
    %v1261 = vunpack.c.l.b16 %v1189
    %v1262 = vunpack.c.h.b16 %v1189
    %v1263 = vunpack.c.l.b16 %v1190
    %v1264 = vunpack.c.h.b16 %v1190
    %v1265 = vunpack.c.l.b16 %v1191
    %v1266 = vunpack.c.h.b16 %v1191
    %v1267 = vunpack.c.l.b16 %v1192
    %v1268 = vunpack.c.h.b16 %v1192
    %v1269 = vunpack.c.l.b16 %v1193
    %v1270 = vunpack.c.h.b16 %v1193
    %v1271 = vunpack.c.l.b16 %v1194
    %v1272 = vunpack.c.h.b16 %v1194
    %v1273 = vunpack.c.l.b16 %v1195
    %v1274 = vunpack.c.h.b16 %v1195
    %v1275 = vunpack.c.l.b16 %v1196
    %v1276 = vunpack.c.h.b16 %v1196
    %v1277 = vunpack.c.l.b16 %v1197
    %v1278 = vunpack.c.h.b16 %v1197
    %v1279 = vunpack.c.l.b16 %v1198
    %v1280 = vunpack.c.h.b16 %v1198
    %v1281 = vunpack.c.l.b16 %v1199
    %v1282 = vunpack.c.h.b16 %v1199
    %v1283 = vunpack.c.l.b16 %v1200
    %v1284 = vunpack.c.h.b16 %v1200
    %v1285 = vunpack.c.l.b16 %v1201
    %v1286 = vunpack.c.h.b16 %v1201
    %v1287 = vunpack.c.l.b16 %v1202
    %v1288 = vunpack.c.h.b16 %v1202
    %v1289 = vpack.c.b16 %v1241, %v1235
    %v1290 = vpack.c.b16 %v1242, %v1236
    %v1291 = vpack.c.b16 %v1243, %v1237
    %v1292 = vpack.c.b16 %v1244, %v1238
    %v1293 = vpack.c.b16 %v1245, %v1239
    %v1294 = vpack.c.b16 %v1246, %v1240
    %v1295 = vpack.c.b16 %v1253, %v1247
    %v1296 = vpack.c.b16 %v1254, %v1248
    %v1297 = vpack.c.b16 %v1255, %v1249
    %v1298 = vpack.c.b16 %v1256, %v1250
    %v1299 = vpack.c.b16 %v1257, %v1251
    %v1300 = vpack.c.b16 %v1258, %v1252
    %v1301 = vpack.c.b16 %v1265, %v1259
    %v1302 = vpack.c.b16 %v1266, %v1260
    %v1303 = vpack.c.b16 %v1267, %v1261
    %v1304 = vpack.c.b16 %v1268, %v1262
    %v1305 = vpack.c.b16 %v1269, %v1263
    %v1306 = vpack.c.b16 %v1270, %v1264
    %v1307 = vpack.c.b16 %v1277, %v1271
    %v1308 = vpack.c.b16 %v1278, %v1272
    %v1309 = vpack.c.b16 %v1279, %v1273
    %v1310 = vpack.c.b16 %v1280, %v1274
    %v1311 = vpack.c.b16 %v1281, %v1275
    %v1312 = vpack.c.b16 %v1282, %v1276
    %v1313 = vpack.c.b16 %v1283, %v1283
    %v1314 = vpack.c.b16 %v1284, %v1284
    %v1315 = vpack.c.b16 %v1285, %v1285
    %v1316 = vpack.c.b16 %v1286, %v1286
    %v1317 = vpack.c.b16 %v1287, %v1287
    %v1318 = vpack.c.b16 %v1288, %v1288
    %vm1343 = vcmask 588800
    %v1345 = vsel %vm1343, %v1175, 0
    %vm1347 = vcmask 1043456
    %v1349 = vsel %vm1347, %v1313, 0
    %v1352 = vsel %vm1347, %v1314, 0
    %v1355 = vsel %vm1347, %v1315, 0
    %v1358 = vsel %vm1347, %v1316, 0
    %v1361 = vsel %vm1347, %v1317, 0
    %v1364 = vsel %vm1347, %v1318, 0
    %1366 = vmatprep.subr.bf16.mxu0 0
    %1367 = vmatpush1.bf16.msra.mxu0 0
    %1368 = vmatprep.subr.bf16.mxu0 0
    %1369 = vmatpush1.bf16.msra.mxu0 0
    %1370 = vmatprep.subr.bf16.mxu0 0
    %1371 = vmatpush1.bf16.msra.mxu0 0
    %1372 = vmatprep.subr.bf16.mxu0 %v1352
    %1373 = vmatpush1.bf16.msra.mxu0 %v1349
    %1374 = vmatprep.subr.bf16.mxu0 %v1308
    %1375 = vmatpush1.bf16.msra.mxu0 %v1307
    %1376 = vmatprep.subr.bf16.mxu0 %v1302
    %1377 = vmatpush1.bf16.msra.mxu0 %v1301
    %1378 = vmatprep.subr.bf16.mxu0 %v1296
    %1379 = vmatpush1.bf16.msra.mxu0 %v1295
    %1380 = vmatprep.subr.bf16.mxu0 %v1290
    %1381 = vmatpush1.bf16.msra.mxu0 %v1289
    %1382 = vmatprep.subr.bf16.mxu0 0
    %1383 = vmatpush2.bf16.msra.mxu0 0
    %1384 = vmatprep.subr.bf16.mxu0 0
    %1385 = vmatpush2.bf16.msra.mxu0 0
    %1386 = vmatprep.subr.bf16.mxu0 0
    %1387 = vmatpush2.bf16.msra.mxu0 0
    %1388 = vmatprep.subr.bf16.mxu0 0
    %1389 = vmatpush2.bf16.msra.mxu0 0
    %1390 = vmatprep.subr.bf16.mxu0 0
    %1391 = vmatpush2.bf16.msra.mxu0 0
    %1392 = vmatprep.subr.bf16.mxu0 0
    %1393 = vmatpush2.bf16.msra.mxu0 0
    %1394 = vmatprep.subr.bf16.mxu0 0
    %1395 = vmatpush2.bf16.msra.mxu0 0
    %1396 = vmatprep.subr.bf16.mxu0 0
    %1397 = vmatpush2.bf16.msra.mxu0 0
    %1398 = vmatprep.mubr.bf16.mxu0 0
    %1399 = vmatmul.mubr.bf16.gmra.mxu0 %v1345
    %v1400 = vpop.f32.mrf.mxu0
    %v1401 = vadd.f32 %v1206, %v1400
    %v1402 = vpop.f32.mrf.mxu0
    %v1403 = vadd.f32 %v1206, %v1402
    %v1404 = vpop.f32.mrf.mxu0
    %v1405 = vpop.f32.mrf.mxu0
    %1406 = vdwg.mxu0
    %1407 = vmatprep.subr.bf16.mxu0 0
    %1408 = vmatpush1.bf16.msra.mxu0 0
    %1409 = vmatprep.subr.bf16.mxu0 0
    %1410 = vmatpush1.bf16.msra.mxu0 0
    %1411 = vmatprep.subr.bf16.mxu0 0
    %1412 = vmatpush1.bf16.msra.mxu0 0
    %1413 = vmatprep.subr.bf16.mxu0 %v1358
    %1414 = vmatpush1.bf16.msra.mxu0 %v1355
    %1415 = vmatprep.subr.bf16.mxu0 %v1310
    %1416 = vmatpush1.bf16.msra.mxu0 %v1309
    %1417 = vmatprep.subr.bf16.mxu0 %v1304
    %1418 = vmatpush1.bf16.msra.mxu0 %v1303
    %1419 = vmatprep.subr.bf16.mxu0 %v1298
    %1420 = vmatpush1.bf16.msra.mxu0 %v1297
    %1421 = vmatprep.subr.bf16.mxu0 %v1292
    %1422 = vmatpush1.bf16.msra.mxu0 %v1291
    %1423 = vmatprep.subr.bf16.mxu0 0
    %1424 = vmatpush2.bf16.msra.mxu0 0
    %1425 = vmatprep.subr.bf16.mxu0 0
    %1426 = vmatpush2.bf16.msra.mxu0 0
    %1427 = vmatprep.subr.bf16.mxu0 0
    %1428 = vmatpush2.bf16.msra.mxu0 0
    %1429 = vmatprep.subr.bf16.mxu0 0
    %1430 = vmatpush2.bf16.msra.mxu0 0
    %1431 = vmatprep.subr.bf16.mxu0 0
    %1432 = vmatpush2.bf16.msra.mxu0 0
    %1433 = vmatprep.subr.bf16.mxu0 0
    %1434 = vmatpush2.bf16.msra.mxu0 0
    %1435 = vmatprep.subr.bf16.mxu0 0
    %1436 = vmatpush2.bf16.msra.mxu0 0
    %1437 = vmatprep.subr.bf16.mxu0 0
    %1438 = vmatpush2.bf16.msra.mxu0 0
    %1439 = vmatprep.mubr.bf16.mxu0 0
    %1440 = vmatmul.mubr.bf16.gmra.mxu0 %v1345
    %v1441 = vpop.f32.mrf.mxu0
    %v1442 = vadd.f32 %v1206, %v1441
    %v1443 = vpop.f32.mrf.mxu0
    %v1444 = vadd.f32 %v1206, %v1443
    %v1445 = vpop.f32.mrf.mxu0
    %v1446 = vpop.f32.mrf.mxu0
    %1447 = vdwg.mxu0
    %1448 = vmatprep.subr.bf16.mxu0 0
    %1449 = vmatpush1.bf16.msra.mxu0 0
    %1450 = vmatprep.subr.bf16.mxu0 0
    %1451 = vmatpush1.bf16.msra.mxu0 0
    %1452 = vmatprep.subr.bf16.mxu0 0
    %1453 = vmatpush1.bf16.msra.mxu0 0
    %1454 = vmatprep.subr.bf16.mxu0 %v1364
    %1455 = vmatpush1.bf16.msra.mxu0 %v1361
    %1456 = vmatprep.subr.bf16.mxu0 %v1312
    %1457 = vmatpush1.bf16.msra.mxu0 %v1311
    %1458 = vmatprep.subr.bf16.mxu0 %v1306
    %1459 = vmatpush1.bf16.msra.mxu0 %v1305
    %1460 = vmatprep.subr.bf16.mxu0 %v1300
    %1461 = vmatpush1.bf16.msra.mxu0 %v1299
    %1462 = vmatprep.subr.bf16.mxu0 %v1294
    %1463 = vmatpush1.bf16.msra.mxu0 %v1293
    %1464 = vmatprep.subr.bf16.mxu0 0
    %1465 = vmatpush2.bf16.msra.mxu0 0
    %1466 = vmatprep.subr.bf16.mxu0 0
    %1467 = vmatpush2.bf16.msra.mxu0 0
    %1468 = vmatprep.subr.bf16.mxu0 0
    %1469 = vmatpush2.bf16.msra.mxu0 0
    %1470 = vmatprep.subr.bf16.mxu0 0
    %1471 = vmatpush2.bf16.msra.mxu0 0
    %1472 = vmatprep.subr.bf16.mxu0 0
    %1473 = vmatpush2.bf16.msra.mxu0 0
    %1474 = vmatprep.subr.bf16.mxu0 0
    %1475 = vmatpush2.bf16.msra.mxu0 0
    %1476 = vmatprep.subr.bf16.mxu0 0
    %1477 = vmatpush2.bf16.msra.mxu0 0
    %1478 = vmatprep.subr.bf16.mxu0 0
    %1479 = vmatpush2.bf16.msra.mxu0 0
    %1480 = vmatprep.mubr.bf16.mxu0 0
    %1481 = vmatmul.mubr.bf16.gmra.mxu0 %v1345
    %v1482 = vpop.f32.mrf.mxu0
    %v1483 = vadd.f32 %v1206, %v1482
    %v1484 = vpop.f32.mrf.mxu0
    %v1485 = vadd.f32 %v1206, %v1484
    %v1486 = vpop.f32.mrf.mxu0
    %v1487 = vpop.f32.mrf.mxu0
    %1488 = vdwg.mxu0
    %v1489 = vmax.f32 %v1401, 0.0
    %v1490 = vmax.f32 %v1403, 0.0
    %v1491 = vmax.f32 %v1442, 0.0
    %v1492 = vmax.f32 %v1444, 0.0
    %v1493 = vmax.f32 %v1483, 0.0
    %v1494 = vmax.f32 %v1485, 0.0
    %1495 = vst [vmem:[#allocation5] sm:$0xff] %v1489
    %1496 = vst [vmem:[#allocation5 + $0x8] sm:$0xff] %v1490
    %1497 = vst [vmem:[#allocation5 + $0x10] sm:$0xff] %v1491
    %s1498 = scalar_lea.vmem [#allocation5], 24
    %1499 = vst [vmem:[%s1498] sm:$0xff] %v1492
    %1500 = vst [vmem:[%s1498 + $0x8] sm:$0xff] %v1493
    %1501 = vst [vmem:[%s1498 + $0x10] sm:$0xff] %v1494
    // Predicated region
    $region26: #{tpu_custom_call.1} parent=1 // pred_check
      _
    $region27: #{tpu_custom_call.1} parent=1 // pred_check_branch
      %1503 = sbr.rel (0) target = $region29
    $region28: #{tpu_custom_call.1} parent=1 // pred_region
      %s1505 = ssub.s32 768, 768
      %1506 = vsyncadd [#allocation6], %s1505
      %s1507 = sshll.u32 [#allocation5], 4
      %s1508 = int_to_ptr.vmem [resolvable:$true] %s1507
      %1513 = dma.vmem_to_hbm [thread:$0]  %s1508, 768, %s6, [#allocation6], 384, 384, 24
    $region29: #{tpu_custom_call.1} parent=1 // pred_fallthru
      _
    // Predicated region
    $region30: #{tpu_custom_call.1} parent=1 // pred_check
      _
    $region31: #{tpu_custom_call.1} parent=1 // pred_check_branch
      %1515 = sbr.rel (0) target = $region33
    $region32: #{tpu_custom_call.1} parent=1 // pred_region
      %1516 = dma.done [#allocation6], 768
    $region33: #{tpu_custom_call.1} parent=1 // pred_fallthru
      _
    %1517 = vsyncpa [#allocation6], 1

</llo_original>
